<compile_context>
chip_gen: v5e
topology: v5e:2x2
jax: 0.10.0
libtpu: 0.0.40
codegen_flags: <defaults>
</compile_context>

<pallas_src>
import jax
import jax.numpy as jnp
from jax import lax
from jax.experimental import pallas as pl
from jax.experimental.pallas import tpu as pltpu

_BN_EPS = 1e-5
_LEAKY_SLOPE = 0.01


def _fusion_kernel(fp_ref, i2_ref, i3_ref,
                   wp_ref, bp_ref, wi_ref, bi_ref,
                   wf_ref, bf_ref,
                   g1_ref, be1_ref, g2_ref, be2_ref,
                   out_ref):
    fp = fp_ref[...]                      # [B, Cp, Np]  f32 (channels-first)
    i2 = i2_ref[...]                      # [B, Ci, HW]  f32
    i3 = i3_ref[...]                      # [B, Ci, HW]  f32
    wp = wp_ref[...]                      # [mid, Cp]    bf16
    wi = wi_ref[...]                      # [mid, Ci]    bf16
    wf = wf_ref[...]                      # [Cp, mid+Cp] bf16
    bp = bp_ref[...]                      # [mid, 1]     f32
    bi = bi_ref[...]                      # [mid, 1]     f32
    bf = bf_ref[...]                      # [Cp, 1]      f32
    g1, be1 = g1_ref[...], be1_ref[...]   # bn1 affine   [mid, 1]
    g2, be2 = g2_ref[...], be2_ref[...]   # bn2 affine   [Cp, 1]

    B = fp.shape[0]
    mid = wp.shape[0]
    scale = float(mid) ** -0.5            # torch: img.shape[1] ** (-0.5)

    def proj(w, x, b):
        """Channels-first linear: w [O, C] bf16, x [B, C, T] f32 -> [B, O, T] f32."""
        xb = x.astype(jnp.bfloat16)
        ys = [jnp.dot(w, xb[i], preferred_element_type=jnp.float32)
              for i in range(B)]
        return jnp.stack(ys, axis=0) + b[None]

    def bn(x, gamma, beta):
        """Training-mode BatchNorm1d over (batch, tokens); x [B, C, T] f32."""
        mean = jnp.mean(x, axis=(0, 2), keepdims=True)
        var = jnp.mean((x - mean) ** 2, axis=(0, 2), keepdims=True)   # biased, like torch
        return (x - mean) * (gamma[None] * lax.rsqrt(var + _BN_EPS)) + beta[None]

    def attend(q, kv):
        """q [B, mid, Nq], kv [B, mid, Nk] (f32) -> context [B, mid, Nq] f32."""
        qb = q.astype(jnp.bfloat16)
        kb = kv.astype(jnp.bfloat16)
        outs = []
        for i in range(B):
            # Q^T K : contraction (mid) is the sublane axis of both operands (TN).
            logits = lax.dot_general(qb[i], kb[i], (((0,), (0,)), ((), ())),
                                     preferred_element_type=jnp.float32) * scale
            m = jnp.max(logits, axis=-1, keepdims=True)
            e = jnp.exp(logits - m)
            p = e * pl.reciprocal(jnp.sum(e, axis=-1, keepdims=True), approx=True)
            # channels-first context:  kv @ p^T  (contraction over keys, NT).
            outs.append(lax.dot_general(kb[i], p.astype(jnp.bfloat16),
                                        (((1,), (1,)), ((), ())),
                                        preferred_element_type=jnp.float32))
        return jnp.stack(outs, axis=0)

    def fuse(ctx, pts):
        """fusion_mlp(cat([ctx, pts], channel)): single [Cp, mid+Cp] matmul."""
        ys = []
        for i in range(B):
            cat = jnp.concatenate([ctx[i], pts[i]], axis=0).astype(jnp.bfloat16)
            ys.append(jnp.dot(wf, cat, preferred_element_type=jnp.float32))
        return jnp.stack(ys, axis=0) + bf[None]

    # ---- stage 1 ----
    point = bn(proj(wp, fp, bp), g1, be1)           # [B, mid, Np]
    img = bn(proj(wi, i2, bi), g1, be1)             # [B, mid, HW]
    ao1 = attend(point, img)                        # [B, mid, Np]
    ff1 = bn(fuse(ao1, fp), g2, be2) + fp           # [B, Cp, Np]

    # ---- stage 2 ----
    img3 = bn(proj(wi, i3, bi), g1, be1)            # [B, mid, HW]
    ffus = bn(proj(wp, ff1, bp), g1, be1)           # [B, mid, Np]
    ao2 = attend(ffus, img3)                        # [B, mid, Np]
    ff2 = bn(fuse(ao2, ff1), g2, be2) + ff1         # [B, Cp, Np]

    # fused epilogue: LeakyReLU(0.01) straight into the lane-dense output store.
    out_ref[...] = jnp.where(ff2 >= 0, ff2, _LEAKY_SLOPE * ff2)


def fusion_model_forward(F_point, F_img2d, F_img3d, params):
    """F_point: [B, Cp, Np]; F_img2d/F_img3d: [B, Ci, H, W]. Returns [B, Cp, Np]."""
    B, Cp, Np = F_point.shape
    _, Ci, H, W = F_img2d.shape
    HW = H * W
    mid = params['wp'].shape[0]

    # No transposes: channels-first in, channels-first out.
    fp = F_point.astype(jnp.float32)                       # [B, Cp, Np]
    i2 = F_img2d.reshape(B, Ci, HW).astype(jnp.float32)    # [B, Ci, HW] (free reshape)
    i3 = F_img3d.reshape(B, Ci, HW).astype(jnp.float32)

    col = lambda v: v.astype(jnp.float32).reshape(-1, 1)
    args = (fp, i2, i3,
            params['wp'].astype(jnp.bfloat16), col(params['bp']),
            params['wi'].astype(jnp.bfloat16), col(params['bi']),
            params['wf'].astype(jnp.bfloat16), col(params['bf']),
            col(params['g1']), col(params['be1']),
            col(params['g2']), col(params['be2']))

    # VMEM footprint estimate for this full-residency kernel (+ headroom),
    # clamped to the 64 MiB physical VMEM of v7x.
    f32 = 4
    tok = max(Np, HW)
    est = f32 * (3 * B * Cp * Np + 2 * B * Ci * HW
                 + 6 * B * mid * tok + 2 * B * Np * HW + 4 * B * Cp * Np) * 3
    vmem_limit = int(min(max(est, 16 << 20), 64 << 20))

    flops = 2 * B * (mid * Cp * Np            # point_mlp(F_point)
                     + 2 * mid * Ci * HW      # img_mlp(img2d), img_mlp(img3d)
                     + mid * Cp * Np          # point_mlp(fusion_feature1)
                     + 2 * (2 * Np * HW * mid)            # two attention stages
                     + 2 * Cp * (mid + Cp) * Np)          # two fusion MLPs
    bytes_accessed = f32 * (2 * B * Cp * Np + 2 * B * Ci * HW) + sum(
        int(x.size) * x.dtype.itemsize for x in args[3:])
    cost = pl.CostEstimate(flops=int(flops),
                           transcendentals=int(2 * B * Np * (HW + 1)),
                           bytes_accessed=int(bytes_accessed))

    return pl.pallas_call(
        _fusion_kernel,
        out_shape=jax.ShapeDtypeStruct((B, Cp, Np), jnp.float32),
        in_specs=[pl.BlockSpec(memory_space=pltpu.MemorySpace.VMEM)] * len(args),
        out_specs=pl.BlockSpec(memory_space=pltpu.MemorySpace.VMEM),
        compiler_params=pltpu.CompilerParams(vmem_limit_bytes=vmem_limit),
        cost_estimate=cost,
    )(*args)


# ----------------------- pure-JAX f32 reference (mirrors torch code) -----------------------
def _ref_forward(F_point, F_img2d, F_img3d, p):
    def lin(x, w, b):                      # x [..., in], w [out, in], b [out]
        return x @ w.T + b

    def bn_cf(x, g, b):                    # x [B, C, L], training-mode batch stats
        mean = jnp.mean(x, axis=(0, 2), keepdims=True)
        var = jnp.mean((x - mean) ** 2, axis=(0, 2), keepdims=True)
        return (x - mean) * (g.reshape(1, -1, 1) / jnp.sqrt(var + _BN_EPS)) + b.reshape(1, -1, 1)

    B, C = F_img2d.shape[0], F_img2d.shape[1]
    Fp = jnp.transpose(F_point, (0, 2, 1))
    point = bn_cf(jnp.transpose(lin(Fp, p['wp'], p['bp']), (0, 2, 1)), p['g1'], p['be1'])
    I2 = jnp.transpose(F_img2d.reshape(B, C, -1), (0, 2, 1))
    img = bn_cf(jnp.transpose(lin(I2, p['wi'], p['bi']), (0, 2, 1)), p['g1'], p['be1'])
    scale = img.shape[1] ** (-0.5)
    att1 = jax.nn.softmax(jnp.matmul(jnp.transpose(point, (0, 2, 1)), img) * scale, axis=-1)
    ao1 = jnp.matmul(att1, jnp.transpose(img, (0, 2, 1)))
    ff1 = lin(jnp.concatenate([ao1, Fp], axis=2), p['wf'], p['bf'])
    ff1 = jnp.transpose(bn_cf(jnp.transpose(ff1, (0, 2, 1)), p['g2'], p['be2']), (0, 2, 1)) + Fp
    I3 = jnp.transpose(F_img3d.reshape(B, C, -1), (0, 2, 1))
    img3 = bn_cf(jnp.transpose(lin(I3, p['wi'], p['bi']), (0, 2, 1)), p['g1'], p['be1'])
    ffus = bn_cf(jnp.transpose(lin(ff1, p['wp'], p['bp']), (0, 2, 1)), p['g1'], p['be1'])
    att2 = jax.nn.softmax(jnp.matmul(jnp.transpose(ffus, (0, 2, 1)), img3) * scale, axis=-1)
    ao2 = jnp.matmul(att2, jnp.transpose(img3, (0, 2, 1)))
    ff2 = lin(jnp.concatenate([ao2, ff1], axis=2), p['wf'], p['bf'])
    ff2 = jnp.transpose(bn_cf(jnp.transpose(ff2, (0, 2, 1)), p['g2'], p['be2']), (0, 2, 1)) + ff1
    ff2 = jnp.where(ff2 >= 0, ff2, _LEAKY_SLOPE * ff2)
    return jnp.transpose(ff2, (0, 2, 1))


def _init_params(key, img_channel, point_channel, mid_channel):
    """Parameters in PyTorch convention: W [out, in], b [out], BN affine [C]."""
    ks = jax.random.split(key, 10)
    n = lambda k, s, sc=0.1: jax.random.normal(k, s, jnp.float32) * sc
    return {
        'wp': n(ks[0], (mid_channel, point_channel)),                 # point_mlp
        'bp': n(ks[1], (mid_channel,)),
        'wi': n(ks[2], (mid_channel, img_channel)),                   # img_mlp
        'bi': n(ks[3], (mid_channel,)),
        'wf': n(ks[4], (point_channel, mid_channel + point_channel)), # fusion_mlp
        'bf': n(ks[5], (point_channel,)),
        'g1': 1.0 + n(ks[6], (mid_channel,)),                         # bn1 gamma/beta
        'be1': n(ks[7], (mid_channel,)),
        'g2': 1.0 + n(ks[8], (point_channel,)),                       # bn2 gamma/beta
        'be2': n(ks[9], (point_channel,)),
    }


if __name__ == "__main__":
    B = 2
    img_channel = 4
    point_channel = 8
    mid_channel = 32
    N_p = 64
    H = W = 8

    root = jax.random.PRNGKey(0)
    k_par, k_pt, k_i2, k_i3 = jax.random.split(root, 4)
    params = _init_params(k_par, img_channel, point_channel, mid_channel)

    F_point = jax.random.normal(k_pt, (B, point_channel, N_p), jnp.float32)
    F_img2d = jax.random.normal(k_i2, (B, img_channel, H, W), jnp.float32)
    F_img3d = jax.random.normal(k_i3, (B, img_channel, H, W), jnp.float32)

    out = jax.block_until_ready(fusion_model_forward(F_point, F_img2d, F_img3d, params))
    ref = jax.block_until_ready(_ref_forward(F_point, F_img2d, F_img3d, params))

    assert out.shape == (B, point_channel, N_p), out.shape
    # bf16 MXU operands (f32 accumulation) + approx reciprocal vs f32 reference:
    # loosened tolerance; gross layout/BN/concat bugs would be O(1) errors.
    err_max = float(jnp.max(jnp.abs(out - ref)))
    err_rms = float(jnp.sqrt(jnp.mean((out - ref) ** 2)))
    ref_rms = float(jnp.sqrt(jnp.mean(ref ** 2))) + 1e-6
    assert err_max < 0.2 and err_rms < 0.08 * ref_rms, (err_max, err_rms / ref_rms)

    print("KERNEL_OK")
</pallas_src>

<mosaic_0001>
module attributes {stable_mosaic.version = 11 : i64} {
  func.func @_fusion_kernel(%arg0: memref<2x8x64xf32, #tpu.memory_space<vmem>>, %arg1: memref<2x4x64xf32, #tpu.memory_space<vmem>>, %arg2: memref<2x4x64xf32, #tpu.memory_space<vmem>>, %arg3: memref<32x8xbf16, #tpu.memory_space<vmem>>, %arg4: memref<32x1xf32, #tpu.memory_space<vmem>>, %arg5: memref<32x4xbf16, #tpu.memory_space<vmem>>, %arg6: memref<32x1xf32, #tpu.memory_space<vmem>>, %arg7: memref<8x40xbf16, #tpu.memory_space<vmem>>, %arg8: memref<8x1xf32, #tpu.memory_space<vmem>>, %arg9: memref<32x1xf32, #tpu.memory_space<vmem>>, %arg10: memref<32x1xf32, #tpu.memory_space<vmem>>, %arg11: memref<8x1xf32, #tpu.memory_space<vmem>>, %arg12: memref<8x1xf32, #tpu.memory_space<vmem>>, %arg13: memref<2x8x64xf32, #tpu.memory_space<vmem>>) attributes {dimension_semantics = [], scalar_prefetch = 0 : i64, scratch_operands = 0 : i64, tpu.core_type = #tpu.core_type<tc>} {
    %c0 = arith.constant 0 : index
    %c0_0 = arith.constant 0 : index
    %c0_1 = arith.constant 0 : index
    %0 = vector.load %arg0[%c0, %c0_0, %c0_1] : memref<2x8x64xf32, #tpu.memory_space<vmem>>, vector<2x8x64xf32>
    %c0_2 = arith.constant 0 : index
    %c0_3 = arith.constant 0 : index
    %c0_4 = arith.constant 0 : index
    %1 = vector.load %arg1[%c0_2, %c0_3, %c0_4] : memref<2x4x64xf32, #tpu.memory_space<vmem>>, vector<2x4x64xf32>
    %c0_5 = arith.constant 0 : index
    %c0_6 = arith.constant 0 : index
    %c0_7 = arith.constant 0 : index
    %2 = vector.load %arg2[%c0_5, %c0_6, %c0_7] : memref<2x4x64xf32, #tpu.memory_space<vmem>>, vector<2x4x64xf32>
    %c0_8 = arith.constant 0 : index
    %c0_9 = arith.constant 0 : index
    %3 = vector.load %arg3[%c0_8, %c0_9] : memref<32x8xbf16, #tpu.memory_space<vmem>>, vector<32x8xbf16>
    %c0_10 = arith.constant 0 : index
    %c0_11 = arith.constant 0 : index
    %4 = vector.load %arg5[%c0_10, %c0_11] : memref<32x4xbf16, #tpu.memory_space<vmem>>, vector<32x4xbf16>
    %c0_12 = arith.constant 0 : index
    %c0_13 = arith.constant 0 : index
    %5 = vector.load %arg7[%c0_12, %c0_13] : memref<8x40xbf16, #tpu.memory_space<vmem>>, vector<8x40xbf16>
    %c0_14 = arith.constant 0 : index
    %c0_15 = arith.constant 0 : index
    %6 = vector.load %arg4[%c0_14, %c0_15] : memref<32x1xf32, #tpu.memory_space<vmem>>, vector<32x1xf32>
    %c0_16 = arith.constant 0 : index
    %c0_17 = arith.constant 0 : index
    %7 = vector.load %arg6[%c0_16, %c0_17] : memref<32x1xf32, #tpu.memory_space<vmem>>, vector<32x1xf32>
    %c0_18 = arith.constant 0 : index
    %c0_19 = arith.constant 0 : index
    %8 = vector.load %arg8[%c0_18, %c0_19] : memref<8x1xf32, #tpu.memory_space<vmem>>, vector<8x1xf32>
    %c0_20 = arith.constant 0 : index
    %c0_21 = arith.constant 0 : index
    %9 = vector.load %arg9[%c0_20, %c0_21] : memref<32x1xf32, #tpu.memory_space<vmem>>, vector<32x1xf32>
    %c0_22 = arith.constant 0 : index
    %c0_23 = arith.constant 0 : index
    %10 = vector.load %arg10[%c0_22, %c0_23] : memref<32x1xf32, #tpu.memory_space<vmem>>, vector<32x1xf32>
    %c0_24 = arith.constant 0 : index
    %c0_25 = arith.constant 0 : index
    %11 = vector.load %arg11[%c0_24, %c0_25] : memref<8x1xf32, #tpu.memory_space<vmem>>, vector<8x1xf32>
    %c0_26 = arith.constant 0 : index
    %c0_27 = arith.constant 0 : index
    %12 = vector.load %arg12[%c0_26, %c0_27] : memref<8x1xf32, #tpu.memory_space<vmem>>, vector<8x1xf32>
    %13 = arith.truncf %0 : vector<2x8x64xf32> to vector<2x8x64xbf16>
    %14 = vector.extract_strided_slice %13 {offsets = [0, 0, 0], sizes = [1, 8, 64], strides = [1, 1, 1]} : vector<2x8x64xbf16> to vector<1x8x64xbf16>
    %15 = vector.shape_cast %14 : vector<1x8x64xbf16> to vector<8x64xbf16>
    %cst = arith.constant dense<0.000000e+00> : vector<32x64xf32>
    %16 = tpu.matmul %3, %15, %cst {dimension_numbers = #tpu.dot_dimension_numbers<[1], [0], [0], [1], [0, 0, 1, 1], [], []>} : vector<32x8xbf16>, vector<8x64xbf16>, vector<32x64xf32> -> vector<32x64xf32>
    %17 = vector.extract_strided_slice %13 {offsets = [1, 0, 0], sizes = [1, 8, 64], strides = [1, 1, 1]} : vector<2x8x64xbf16> to vector<1x8x64xbf16>
    %18 = vector.shape_cast %17 : vector<1x8x64xbf16> to vector<8x64xbf16>
    %cst_28 = arith.constant dense<0.000000e+00> : vector<32x64xf32>
    %19 = tpu.matmul %3, %18, %cst_28 {dimension_numbers = #tpu.dot_dimension_numbers<[1], [0], [0], [1], [0, 0, 1, 1], [], []>} : vector<32x8xbf16>, vector<8x64xbf16>, vector<32x64xf32> -> vector<32x64xf32>
    %20 = vector.shape_cast %16 : vector<32x64xf32> to vector<1x32x64xf32>
    %21 = vector.shape_cast %19 : vector<32x64xf32> to vector<1x32x64xf32>
    %22 = tpu.concatenate %20, %21 in 0 : vector<1x32x64xf32>, vector<1x32x64xf32> -> vector<2x32x64xf32>
    %23 = vector.shape_cast %6 : vector<32x1xf32> to vector<1x32x1xf32>
    %24 = vector.broadcast %23 : vector<1x32x1xf32> to vector<2x32x64xf32>
    %25 = arith.addf %22, %24 : vector<2x32x64xf32>
    %cst_29 = arith.constant dense<0.000000e+00> : vector<32xf32>
    %26 = vector.multi_reduction <add>, %25, %cst_29 [0, 2] : vector<2x32x64xf32> to vector<32xf32>
    %27 = vector.shape_cast %26 : vector<32xf32> to vector<1x32x1xf32>
    %cst_30 = arith.constant 1.280000e+02 : f32
    %28 = vector.broadcast %cst_30 : f32 to vector<1x32x1xf32>
    %29 = arith.divf %27, %28 : vector<1x32x1xf32>
    %30 = vector.broadcast %29 : vector<1x32x1xf32> to vector<2x32x64xf32>
    %31 = arith.subf %25, %30 : vector<2x32x64xf32>
    %32 = arith.mulf %31, %31 : vector<2x32x64xf32>
    %cst_31 = arith.constant dense<0.000000e+00> : vector<32xf32>
    %33 = vector.multi_reduction <add>, %32, %cst_31 [0, 2] : vector<2x32x64xf32> to vector<32xf32>
    %34 = vector.shape_cast %33 : vector<32xf32> to vector<1x32x1xf32>
    %cst_32 = arith.constant 1.280000e+02 : f32
    %35 = vector.broadcast %cst_32 : f32 to vector<1x32x1xf32>
    %36 = arith.divf %34, %35 : vector<1x32x1xf32>
    %37 = vector.broadcast %29 : vector<1x32x1xf32> to vector<2x32x64xf32>
    %38 = arith.subf %25, %37 : vector<2x32x64xf32>
    %39 = vector.shape_cast %9 : vector<32x1xf32> to vector<1x32x1xf32>
    %cst_33 = arith.constant 9.99999974E-6 : f32
    %40 = vector.broadcast %cst_33 : f32 to vector<1x32x1xf32>
    %41 = arith.addf %36, %40 : vector<1x32x1xf32>
    %42 = math.rsqrt %41 : vector<1x32x1xf32>
    %43 = arith.mulf %39, %42 : vector<1x32x1xf32>
    %44 = vector.broadcast %43 : vector<1x32x1xf32> to vector<2x32x64xf32>
    %45 = arith.mulf %38, %44 : vector<2x32x64xf32>
    %46 = vector.shape_cast %10 : vector<32x1xf32> to vector<1x32x1xf32>
    %47 = vector.broadcast %46 : vector<1x32x1xf32> to vector<2x32x64xf32>
    %48 = arith.addf %45, %47 : vector<2x32x64xf32>
    %49 = arith.truncf %1 : vector<2x4x64xf32> to vector<2x4x64xbf16>
    %50 = vector.extract_strided_slice %49 {offsets = [0, 0, 0], sizes = [1, 4, 64], strides = [1, 1, 1]} : vector<2x4x64xbf16> to vector<1x4x64xbf16>
    %51 = vector.shape_cast %50 : vector<1x4x64xbf16> to vector<4x64xbf16>
    %cst_34 = arith.constant dense<0.000000e+00> : vector<32x64xf32>
    %52 = tpu.matmul %4, %51, %cst_34 {dimension_numbers = #tpu.dot_dimension_numbers<[1], [0], [0], [1], [0, 0, 1, 1], [], []>} : vector<32x4xbf16>, vector<4x64xbf16>, vector<32x64xf32> -> vector<32x64xf32>
    %53 = vector.extract_strided_slice %49 {offsets = [1, 0, 0], sizes = [1, 4, 64], strides = [1, 1, 1]} : vector<2x4x64xbf16> to vector<1x4x64xbf16>
    %54 = vector.shape_cast %53 : vector<1x4x64xbf16> to vector<4x64xbf16>
    %cst_35 = arith.constant dense<0.000000e+00> : vector<32x64xf32>
    %55 = tpu.matmul %4, %54, %cst_35 {dimension_numbers = #tpu.dot_dimension_numbers<[1], [0], [0], [1], [0, 0, 1, 1], [], []>} : vector<32x4xbf16>, vector<4x64xbf16>, vector<32x64xf32> -> vector<32x64xf32>
    %56 = vector.shape_cast %52 : vector<32x64xf32> to vector<1x32x64xf32>
    %57 = vector.shape_cast %55 : vector<32x64xf32> to vector<1x32x64xf32>
    %58 = tpu.concatenate %56, %57 in 0 : vector<1x32x64xf32>, vector<1x32x64xf32> -> vector<2x32x64xf32>
    %59 = vector.shape_cast %7 : vector<32x1xf32> to vector<1x32x1xf32>
    %60 = vector.broadcast %59 : vector<1x32x1xf32> to vector<2x32x64xf32>
    %61 = arith.addf %58, %60 : vector<2x32x64xf32>
    %cst_36 = arith.constant dense<0.000000e+00> : vector<32xf32>
    %62 = vector.multi_reduction <add>, %61, %cst_36 [0, 2] : vector<2x32x64xf32> to vector<32xf32>
    %63 = vector.shape_cast %62 : vector<32xf32> to vector<1x32x1xf32>
    %cst_37 = arith.constant 1.280000e+02 : f32
    %64 = vector.broadcast %cst_37 : f32 to vector<1x32x1xf32>
    %65 = arith.divf %63, %64 : vector<1x32x1xf32>
    %66 = vector.broadcast %65 : vector<1x32x1xf32> to vector<2x32x64xf32>
    %67 = arith.subf %61, %66 : vector<2x32x64xf32>
    %68 = arith.mulf %67, %67 : vector<2x32x64xf32>
    %cst_38 = arith.constant dense<0.000000e+00> : vector<32xf32>
    %69 = vector.multi_reduction <add>, %68, %cst_38 [0, 2] : vector<2x32x64xf32> to vector<32xf32>
    %70 = vector.shape_cast %69 : vector<32xf32> to vector<1x32x1xf32>
    %cst_39 = arith.constant 1.280000e+02 : f32
    %71 = vector.broadcast %cst_39 : f32 to vector<1x32x1xf32>
    %72 = arith.divf %70, %71 : vector<1x32x1xf32>
    %73 = vector.broadcast %65 : vector<1x32x1xf32> to vector<2x32x64xf32>
    %74 = arith.subf %61, %73 : vector<2x32x64xf32>
    %75 = vector.shape_cast %9 : vector<32x1xf32> to vector<1x32x1xf32>
    %cst_40 = arith.constant 9.99999974E-6 : f32
    %76 = vector.broadcast %cst_40 : f32 to vector<1x32x1xf32>
    %77 = arith.addf %72, %76 : vector<1x32x1xf32>
    %78 = math.rsqrt %77 : vector<1x32x1xf32>
    %79 = arith.mulf %75, %78 : vector<1x32x1xf32>
    %80 = vector.broadcast %79 : vector<1x32x1xf32> to vector<2x32x64xf32>
    %81 = arith.mulf %74, %80 : vector<2x32x64xf32>
    %82 = vector.shape_cast %10 : vector<32x1xf32> to vector<1x32x1xf32>
    %83 = vector.broadcast %82 : vector<1x32x1xf32> to vector<2x32x64xf32>
    %84 = arith.addf %81, %83 : vector<2x32x64xf32>
    %85 = arith.truncf %48 : vector<2x32x64xf32> to vector<2x32x64xbf16>
    %86 = arith.truncf %84 : vector<2x32x64xf32> to vector<2x32x64xbf16>
    %87 = vector.extract_strided_slice %85 {offsets = [0, 0, 0], sizes = [1, 32, 64], strides = [1, 1, 1]} : vector<2x32x64xbf16> to vector<1x32x64xbf16>
    %88 = vector.shape_cast %87 : vector<1x32x64xbf16> to vector<32x64xbf16>
    %89 = vector.extract_strided_slice %86 {offsets = [0, 0, 0], sizes = [1, 32, 64], strides = [1, 1, 1]} : vector<2x32x64xbf16> to vector<1x32x64xbf16>
    %90 = vector.shape_cast %89 : vector<1x32x64xbf16> to vector<32x64xbf16>
    %cst_41 = arith.constant dense<0.000000e+00> : vector<64x64xf32>
    %91 = tpu.matmul %88, %90, %cst_41 {dimension_numbers = #tpu.dot_dimension_numbers<[0], [0], [1], [1], [0, 1, 1, 1], [], []>} : vector<32x64xbf16>, vector<32x64xbf16>, vector<64x64xf32> -> vector<64x64xf32>
    %cst_42 = arith.constant 0.176776692 : f32
    %92 = vector.broadcast %cst_42 : f32 to vector<64x64xf32>
    %93 = arith.mulf %91, %92 : vector<64x64xf32>
    %cst_43 = arith.constant dense<0xFF800000> : vector<64xf32>
    %94 = vector.multi_reduction <maximumf>, %93, %cst_43 [1] : vector<64x64xf32> to vector<64xf32>
    %95 = vector.shape_cast %94 : vector<64xf32> to vector<64x1xf32>
    %96 = vector.broadcast %95 : vector<64x1xf32> to vector<64x64xf32>
    %97 = arith.subf %93, %96 : vector<64x64xf32>
    %98 = math.exp %97 : vector<64x64xf32>
    %cst_44 = arith.constant dense<0.000000e+00> : vector<64xf32>
    %99 = vector.multi_reduction <add>, %98, %cst_44 [1] : vector<64x64xf32> to vector<64xf32>
    %100 = vector.shape_cast %99 : vector<64xf32> to vector<64x1xf32>
    %101 = tpu.reciprocal %100 {approx = true} : vector<64x1xf32> -> vector<64x1xf32>
    %102 = vector.broadcast %101 : vector<64x1xf32> to vector<64x64xf32>
    %103 = arith.mulf %98, %102 : vector<64x64xf32>
    %104 = vector.extract_strided_slice %86 {offsets = [0, 0, 0], sizes = [1, 32, 64], strides = [1, 1, 1]} : vector<2x32x64xbf16> to vector<1x32x64xbf16>
    %105 = vector.shape_cast %104 : vector<1x32x64xbf16> to vector<32x64xbf16>
    %106 = arith.truncf %103 : vector<64x64xf32> to vector<64x64xbf16>
    %cst_45 = arith.constant dense<0.000000e+00> : vector<32x64xf32>
    %107 = tpu.matmul %105, %106, %cst_45 {dimension_numbers = #tpu.dot_dimension_numbers<[1], [1], [0], [0], [0, 0, 1, 0], [], []>} : vector<32x64xbf16>, vector<64x64xbf16>, vector<32x64xf32> -> vector<32x64xf32>
    %108 = vector.extract_strided_slice %85 {offsets = [1, 0, 0], sizes = [1, 32, 64], strides = [1, 1, 1]} : vector<2x32x64xbf16> to vector<1x32x64xbf16>
    %109 = vector.shape_cast %108 : vector<1x32x64xbf16> to vector<32x64xbf16>
    %110 = vector.extract_strided_slice %86 {offsets = [1, 0, 0], sizes = [1, 32, 64], strides = [1, 1, 1]} : vector<2x32x64xbf16> to vector<1x32x64xbf16>
    %111 = vector.shape_cast %110 : vector<1x32x64xbf16> to vector<32x64xbf16>
    %cst_46 = arith.constant dense<0.000000e+00> : vector<64x64xf32>
    %112 = tpu.matmul %109, %111, %cst_46 {dimension_numbers = #tpu.dot_dimension_numbers<[0], [0], [1], [1], [0, 1, 1, 1], [], []>} : vector<32x64xbf16>, vector<32x64xbf16>, vector<64x64xf32> -> vector<64x64xf32>
    %cst_47 = arith.constant 0.176776692 : f32
    %113 = vector.broadcast %cst_47 : f32 to vector<64x64xf32>
    %114 = arith.mulf %112, %113 : vector<64x64xf32>
    %cst_48 = arith.constant dense<0xFF800000> : vector<64xf32>
    %115 = vector.multi_reduction <maximumf>, %114, %cst_48 [1] : vector<64x64xf32> to vector<64xf32>
    %116 = vector.shape_cast %115 : vector<64xf32> to vector<64x1xf32>
    %117 = vector.broadcast %116 : vector<64x1xf32> to vector<64x64xf32>
    %118 = arith.subf %114, %117 : vector<64x64xf32>
    %119 = math.exp %118 : vector<64x64xf32>
    %cst_49 = arith.constant dense<0.000000e+00> : vector<64xf32>
    %120 = vector.multi_reduction <add>, %119, %cst_49 [1] : vector<64x64xf32> to vector<64xf32>
    %121 = vector.shape_cast %120 : vector<64xf32> to vector<64x1xf32>
    %122 = tpu.reciprocal %121 {approx = true} : vector<64x1xf32> -> vector<64x1xf32>
    %123 = vector.broadcast %122 : vector<64x1xf32> to vector<64x64xf32>
    %124 = arith.mulf %119, %123 : vector<64x64xf32>
    %125 = vector.extract_strided_slice %86 {offsets = [1, 0, 0], sizes = [1, 32, 64], strides = [1, 1, 1]} : vector<2x32x64xbf16> to vector<1x32x64xbf16>
    %126 = vector.shape_cast %125 : vector<1x32x64xbf16> to vector<32x64xbf16>
    %127 = arith.truncf %124 : vector<64x64xf32> to vector<64x64xbf16>
    %cst_50 = arith.constant dense<0.000000e+00> : vector<32x64xf32>
    %128 = tpu.matmul %126, %127, %cst_50 {dimension_numbers = #tpu.dot_dimension_numbers<[1], [1], [0], [0], [0, 0, 1, 0], [], []>} : vector<32x64xbf16>, vector<64x64xbf16>, vector<32x64xf32> -> vector<32x64xf32>
    %129 = vector.shape_cast %107 : vector<32x64xf32> to vector<1x32x64xf32>
    %130 = vector.shape_cast %128 : vector<32x64xf32> to vector<1x32x64xf32>
    %131 = tpu.concatenate %129, %130 in 0 : vector<1x32x64xf32>, vector<1x32x64xf32> -> vector<2x32x64xf32>
    %132 = vector.extract_strided_slice %131 {offsets = [0, 0, 0], sizes = [1, 32, 64], strides = [1, 1, 1]} : vector<2x32x64xf32> to vector<1x32x64xf32>
    %133 = vector.shape_cast %132 : vector<1x32x64xf32> to vector<32x64xf32>
    %134 = vector.extract_strided_slice %0 {offsets = [0, 0, 0], sizes = [1, 8, 64], strides = [1, 1, 1]} : vector<2x8x64xf32> to vector<1x8x64xf32>
    %135 = vector.shape_cast %134 : vector<1x8x64xf32> to vector<8x64xf32>
    %136 = tpu.concatenate %133, %135 in 0 : vector<32x64xf32>, vector<8x64xf32> -> vector<40x64xf32>
    %137 = arith.truncf %136 : vector<40x64xf32> to vector<40x64xbf16>
    %cst_51 = arith.constant dense<0.000000e+00> : vector<8x64xf32>
    %138 = tpu.matmul %5, %137, %cst_51 {dimension_numbers = #tpu.dot_dimension_numbers<[1], [0], [0], [1], [0, 0, 1, 1], [], []>} : vector<8x40xbf16>, vector<40x64xbf16>, vector<8x64xf32> -> vector<8x64xf32>
    %139 = vector.extract_strided_slice %131 {offsets = [1, 0, 0], sizes = [1, 32, 64], strides = [1, 1, 1]} : vector<2x32x64xf32> to vector<1x32x64xf32>
    %140 = vector.shape_cast %139 : vector<1x32x64xf32> to vector<32x64xf32>
    %141 = vector.extract_strided_slice %0 {offsets = [1, 0, 0], sizes = [1, 8, 64], strides = [1, 1, 1]} : vector<2x8x64xf32> to vector<1x8x64xf32>
    %142 = vector.shape_cast %141 : vector<1x8x64xf32> to vector<8x64xf32>
    %143 = tpu.concatenate %140, %142 in 0 : vector<32x64xf32>, vector<8x64xf32> -> vector<40x64xf32>
    %144 = arith.truncf %143 : vector<40x64xf32> to vector<40x64xbf16>
    %cst_52 = arith.constant dense<0.000000e+00> : vector<8x64xf32>
    %145 = tpu.matmul %5, %144, %cst_52 {dimension_numbers = #tpu.dot_dimension_numbers<[1], [0], [0], [1], [0, 0, 1, 1], [], []>} : vector<8x40xbf16>, vector<40x64xbf16>, vector<8x64xf32> -> vector<8x64xf32>
    %146 = vector.shape_cast %138 : vector<8x64xf32> to vector<1x8x64xf32>
    %147 = vector.shape_cast %145 : vector<8x64xf32> to vector<1x8x64xf32>
    %148 = tpu.concatenate %146, %147 in 0 : vector<1x8x64xf32>, vector<1x8x64xf32> -> vector<2x8x64xf32>
    %149 = vector.shape_cast %8 : vector<8x1xf32> to vector<1x8x1xf32>
    %150 = vector.broadcast %149 : vector<1x8x1xf32> to vector<2x8x64xf32>
    %151 = arith.addf %148, %150 : vector<2x8x64xf32>
    %cst_53 = arith.constant dense<0.000000e+00> : vector<8xf32>
    %152 = vector.multi_reduction <add>, %151, %cst_53 [0, 2] : vector<2x8x64xf32> to vector<8xf32>
    %153 = vector.shape_cast %152 : vector<8xf32> to vector<1x8x1xf32>
    %cst_54 = arith.constant 1.280000e+02 : f32
    %154 = vector.broadcast %cst_54 : f32 to vector<1x8x1xf32>
    %155 = arith.divf %153, %154 : vector<1x8x1xf32>
    %156 = vector.broadcast %155 : vector<1x8x1xf32> to vector<2x8x64xf32>
    %157 = arith.subf %151, %156 : vector<2x8x64xf32>
    %158 = arith.mulf %157, %157 : vector<2x8x64xf32>
    %cst_55 = arith.constant dense<0.000000e+00> : vector<8xf32>
    %159 = vector.multi_reduction <add>, %158, %cst_55 [0, 2] : vector<2x8x64xf32> to vector<8xf32>
    %160 = vector.shape_cast %159 : vector<8xf32> to vector<1x8x1xf32>
    %cst_56 = arith.constant 1.280000e+02 : f32
    %161 = vector.broadcast %cst_56 : f32 to vector<1x8x1xf32>
    %162 = arith.divf %160, %161 : vector<1x8x1xf32>
    %163 = vector.broadcast %155 : vector<1x8x1xf32> to vector<2x8x64xf32>
    %164 = arith.subf %151, %163 : vector<2x8x64xf32>
    %165 = vector.shape_cast %11 : vector<8x1xf32> to vector<1x8x1xf32>
    %cst_57 = arith.constant 9.99999974E-6 : f32
    %166 = vector.broadcast %cst_57 : f32 to vector<1x8x1xf32>
    %167 = arith.addf %162, %166 : vector<1x8x1xf32>
    %168 = math.rsqrt %167 : vector<1x8x1xf32>
    %169 = arith.mulf %165, %168 : vector<1x8x1xf32>
    %170 = vector.broadcast %169 : vector<1x8x1xf32> to vector<2x8x64xf32>
    %171 = arith.mulf %164, %170 : vector<2x8x64xf32>
    %172 = vector.shape_cast %12 : vector<8x1xf32> to vector<1x8x1xf32>
    %173 = vector.broadcast %172 : vector<1x8x1xf32> to vector<2x8x64xf32>
    %174 = arith.addf %171, %173 : vector<2x8x64xf32>
    %175 = arith.addf %174, %0 : vector<2x8x64xf32>
    %176 = arith.truncf %2 : vector<2x4x64xf32> to vector<2x4x64xbf16>
    %177 = vector.extract_strided_slice %176 {offsets = [0, 0, 0], sizes = [1, 4, 64], strides = [1, 1, 1]} : vector<2x4x64xbf16> to vector<1x4x64xbf16>
    %178 = vector.shape_cast %177 : vector<1x4x64xbf16> to vector<4x64xbf16>
    %cst_58 = arith.constant dense<0.000000e+00> : vector<32x64xf32>
    %179 = tpu.matmul %4, %178, %cst_58 {dimension_numbers = #tpu.dot_dimension_numbers<[1], [0], [0], [1], [0, 0, 1, 1], [], []>} : vector<32x4xbf16>, vector<4x64xbf16>, vector<32x64xf32> -> vector<32x64xf32>
    %180 = vector.extract_strided_slice %176 {offsets = [1, 0, 0], sizes = [1, 4, 64], strides = [1, 1, 1]} : vector<2x4x64xbf16> to vector<1x4x64xbf16>
    %181 = vector.shape_cast %180 : vector<1x4x64xbf16> to vector<4x64xbf16>
    %cst_59 = arith.constant dense<0.000000e+00> : vector<32x64xf32>
    %182 = tpu.matmul %4, %181, %cst_59 {dimension_numbers = #tpu.dot_dimension_numbers<[1], [0], [0], [1], [0, 0, 1, 1], [], []>} : vector<32x4xbf16>, vector<4x64xbf16>, vector<32x64xf32> -> vector<32x64xf32>
    %183 = vector.shape_cast %179 : vector<32x64xf32> to vector<1x32x64xf32>
    %184 = vector.shape_cast %182 : vector<32x64xf32> to vector<1x32x64xf32>
    %185 = tpu.concatenate %183, %184 in 0 : vector<1x32x64xf32>, vector<1x32x64xf32> -> vector<2x32x64xf32>
    %186 = vector.shape_cast %7 : vector<32x1xf32> to vector<1x32x1xf32>
    %187 = vector.broadcast %186 : vector<1x32x1xf32> to vector<2x32x64xf32>
    %188 = arith.addf %185, %187 : vector<2x32x64xf32>
    %cst_60 = arith.constant dense<0.000000e+00> : vector<32xf32>
    %189 = vector.multi_reduction <add>, %188, %cst_60 [0, 2] : vector<2x32x64xf32> to vector<32xf32>
    %190 = vector.shape_cast %189 : vector<32xf32> to vector<1x32x1xf32>
    %cst_61 = arith.constant 1.280000e+02 : f32
    %191 = vector.broadcast %cst_61 : f32 to vector<1x32x1xf32>
    %192 = arith.divf %190, %191 : vector<1x32x1xf32>
    %193 = vector.broadcast %192 : vector<1x32x1xf32> to vector<2x32x64xf32>
    %194 = arith.subf %188, %193 : vector<2x32x64xf32>
    %195 = arith.mulf %194, %194 : vector<2x32x64xf32>
    %cst_62 = arith.constant dense<0.000000e+00> : vector<32xf32>
    %196 = vector.multi_reduction <add>, %195, %cst_62 [0, 2] : vector<2x32x64xf32> to vector<32xf32>
    %197 = vector.shape_cast %196 : vector<32xf32> to vector<1x32x1xf32>
    %cst_63 = arith.constant 1.280000e+02 : f32
    %198 = vector.broadcast %cst_63 : f32 to vector<1x32x1xf32>
    %199 = arith.divf %197, %198 : vector<1x32x1xf32>
    %200 = vector.broadcast %192 : vector<1x32x1xf32> to vector<2x32x64xf32>
    %201 = arith.subf %188, %200 : vector<2x32x64xf32>
    %202 = vector.shape_cast %9 : vector<32x1xf32> to vector<1x32x1xf32>
    %cst_64 = arith.constant 9.99999974E-6 : f32
    %203 = vector.broadcast %cst_64 : f32 to vector<1x32x1xf32>
    %204 = arith.addf %199, %203 : vector<1x32x1xf32>
    %205 = math.rsqrt %204 : vector<1x32x1xf32>
    %206 = arith.mulf %202, %205 : vector<1x32x1xf32>
    %207 = vector.broadcast %206 : vector<1x32x1xf32> to vector<2x32x64xf32>
    %208 = arith.mulf %201, %207 : vector<2x32x64xf32>
    %209 = vector.shape_cast %10 : vector<32x1xf32> to vector<1x32x1xf32>
    %210 = vector.broadcast %209 : vector<1x32x1xf32> to vector<2x32x64xf32>
    %211 = arith.addf %208, %210 : vector<2x32x64xf32>
    %212 = arith.truncf %175 : vector<2x8x64xf32> to vector<2x8x64xbf16>
    %213 = vector.extract_strided_slice %212 {offsets = [0, 0, 0], sizes = [1, 8, 64], strides = [1, 1, 1]} : vector<2x8x64xbf16> to vector<1x8x64xbf16>
    %214 = vector.shape_cast %213 : vector<1x8x64xbf16> to vector<8x64xbf16>
    %cst_65 = arith.constant dense<0.000000e+00> : vector<32x64xf32>
    %215 = tpu.matmul %3, %214, %cst_65 {dimension_numbers = #tpu.dot_dimension_numbers<[1], [0], [0], [1], [0, 0, 1, 1], [], []>} : vector<32x8xbf16>, vector<8x64xbf16>, vector<32x64xf32> -> vector<32x64xf32>
    %216 = vector.extract_strided_slice %212 {offsets = [1, 0, 0], sizes = [1, 8, 64], strides = [1, 1, 1]} : vector<2x8x64xbf16> to vector<1x8x64xbf16>
    %217 = vector.shape_cast %216 : vector<1x8x64xbf16> to vector<8x64xbf16>
    %cst_66 = arith.constant dense<0.000000e+00> : vector<32x64xf32>
    %218 = tpu.matmul %3, %217, %cst_66 {dimension_numbers = #tpu.dot_dimension_numbers<[1], [0], [0], [1], [0, 0, 1, 1], [], []>} : vector<32x8xbf16>, vector<8x64xbf16>, vector<32x64xf32> -> vector<32x64xf32>
    %219 = vector.shape_cast %215 : vector<32x64xf32> to vector<1x32x64xf32>
    %220 = vector.shape_cast %218 : vector<32x64xf32> to vector<1x32x64xf32>
    %221 = tpu.concatenate %219, %220 in 0 : vector<1x32x64xf32>, vector<1x32x64xf32> -> vector<2x32x64xf32>
    %222 = vector.shape_cast %6 : vector<32x1xf32> to vector<1x32x1xf32>
    %223 = vector.broadcast %222 : vector<1x32x1xf32> to vector<2x32x64xf32>
    %224 = arith.addf %221, %223 : vector<2x32x64xf32>
    %cst_67 = arith.constant dense<0.000000e+00> : vector<32xf32>
    %225 = vector.multi_reduction <add>, %224, %cst_67 [0, 2] : vector<2x32x64xf32> to vector<32xf32>
    %226 = vector.shape_cast %225 : vector<32xf32> to vector<1x32x1xf32>
    %cst_68 = arith.constant 1.280000e+02 : f32
    %227 = vector.broadcast %cst_68 : f32 to vector<1x32x1xf32>
    %228 = arith.divf %226, %227 : vector<1x32x1xf32>
    %229 = vector.broadcast %228 : vector<1x32x1xf32> to vector<2x32x64xf32>
    %230 = arith.subf %224, %229 : vector<2x32x64xf32>
    %231 = arith.mulf %230, %230 : vector<2x32x64xf32>
    %cst_69 = arith.constant dense<0.000000e+00> : vector<32xf32>
    %232 = vector.multi_reduction <add>, %231, %cst_69 [0, 2] : vector<2x32x64xf32> to vector<32xf32>
    %233 = vector.shape_cast %232 : vector<32xf32> to vector<1x32x1xf32>
    %cst_70 = arith.constant 1.280000e+02 : f32
    %234 = vector.broadcast %cst_70 : f32 to vector<1x32x1xf32>
    %235 = arith.divf %233, %234 : vector<1x32x1xf32>
    %236 = vector.broadcast %228 : vector<1x32x1xf32> to vector<2x32x64xf32>
    %237 = arith.subf %224, %236 : vector<2x32x64xf32>
    %238 = vector.shape_cast %9 : vector<32x1xf32> to vector<1x32x1xf32>
    %cst_71 = arith.constant 9.99999974E-6 : f32
    %239 = vector.broadcast %cst_71 : f32 to vector<1x32x1xf32>
    %240 = arith.addf %235, %239 : vector<1x32x1xf32>
    %241 = math.rsqrt %240 : vector<1x32x1xf32>
    %242 = arith.mulf %238, %241 : vector<1x32x1xf32>
    %243 = vector.broadcast %242 : vector<1x32x1xf32> to vector<2x32x64xf32>
    %244 = arith.mulf %237, %243 : vector<2x32x64xf32>
    %245 = vector.shape_cast %10 : vector<32x1xf32> to vector<1x32x1xf32>
    %246 = vector.broadcast %245 : vector<1x32x1xf32> to vector<2x32x64xf32>
    %247 = arith.addf %244, %246 : vector<2x32x64xf32>
    %248 = arith.truncf %247 : vector<2x32x64xf32> to vector<2x32x64xbf16>
    %249 = arith.truncf %211 : vector<2x32x64xf32> to vector<2x32x64xbf16>
    %250 = vector.extract_strided_slice %248 {offsets = [0, 0, 0], sizes = [1, 32, 64], strides = [1, 1, 1]} : vector<2x32x64xbf16> to vector<1x32x64xbf16>
    %251 = vector.shape_cast %250 : vector<1x32x64xbf16> to vector<32x64xbf16>
    %252 = vector.extract_strided_slice %249 {offsets = [0, 0, 0], sizes = [1, 32, 64], strides = [1, 1, 1]} : vector<2x32x64xbf16> to vector<1x32x64xbf16>
    %253 = vector.shape_cast %252 : vector<1x32x64xbf16> to vector<32x64xbf16>
    %cst_72 = arith.constant dense<0.000000e+00> : vector<64x64xf32>
    %254 = tpu.matmul %251, %253, %cst_72 {dimension_numbers = #tpu.dot_dimension_numbers<[0], [0], [1], [1], [0, 1, 1, 1], [], []>} : vector<32x64xbf16>, vector<32x64xbf16>, vector<64x64xf32> -> vector<64x64xf32>
    %cst_73 = arith.constant 0.176776692 : f32
    %255 = vector.broadcast %cst_73 : f32 to vector<64x64xf32>
    %256 = arith.mulf %254, %255 : vector<64x64xf32>
    %cst_74 = arith.constant dense<0xFF800000> : vector<64xf32>
    %257 = vector.multi_reduction <maximumf>, %256, %cst_74 [1] : vector<64x64xf32> to vector<64xf32>
    %258 = vector.shape_cast %257 : vector<64xf32> to vector<64x1xf32>
    %259 = vector.broadcast %258 : vector<64x1xf32> to vector<64x64xf32>
    %260 = arith.subf %256, %259 : vector<64x64xf32>
    %261 = math.exp %260 : vector<64x64xf32>
    %cst_75 = arith.constant dense<0.000000e+00> : vector<64xf32>
    %262 = vector.multi_reduction <add>, %261, %cst_75 [1] : vector<64x64xf32> to vector<64xf32>
    %263 = vector.shape_cast %262 : vector<64xf32> to vector<64x1xf32>
    %264 = tpu.reciprocal %263 {approx = true} : vector<64x1xf32> -> vector<64x1xf32>
    %265 = vector.broadcast %264 : vector<64x1xf32> to vector<64x64xf32>
    %266 = arith.mulf %261, %265 : vector<64x64xf32>
    %267 = vector.extract_strided_slice %249 {offsets = [0, 0, 0], sizes = [1, 32, 64], strides = [1, 1, 1]} : vector<2x32x64xbf16> to vector<1x32x64xbf16>
    %268 = vector.shape_cast %267 : vector<1x32x64xbf16> to vector<32x64xbf16>
    %269 = arith.truncf %266 : vector<64x64xf32> to vector<64x64xbf16>
    %cst_76 = arith.constant dense<0.000000e+00> : vector<32x64xf32>
    %270 = tpu.matmul %268, %269, %cst_76 {dimension_numbers = #tpu.dot_dimension_numbers<[1], [1], [0], [0], [0, 0, 1, 0], [], []>} : vector<32x64xbf16>, vector<64x64xbf16>, vector<32x64xf32> -> vector<32x64xf32>
    %271 = vector.extract_strided_slice %248 {offsets = [1, 0, 0], sizes = [1, 32, 64], strides = [1, 1, 1]} : vector<2x32x64xbf16> to vector<1x32x64xbf16>
    %272 = vector.shape_cast %271 : vector<1x32x64xbf16> to vector<32x64xbf16>
    %273 = vector.extract_strided_slice %249 {offsets = [1, 0, 0], sizes = [1, 32, 64], strides = [1, 1, 1]} : vector<2x32x64xbf16> to vector<1x32x64xbf16>
    %274 = vector.shape_cast %273 : vector<1x32x64xbf16> to vector<32x64xbf16>
    %cst_77 = arith.constant dense<0.000000e+00> : vector<64x64xf32>
    %275 = tpu.matmul %272, %274, %cst_77 {dimension_numbers = #tpu.dot_dimension_numbers<[0], [0], [1], [1], [0, 1, 1, 1], [], []>} : vector<32x64xbf16>, vector<32x64xbf16>, vector<64x64xf32> -> vector<64x64xf32>
    %cst_78 = arith.constant 0.176776692 : f32
    %276 = vector.broadcast %cst_78 : f32 to vector<64x64xf32>
    %277 = arith.mulf %275, %276 : vector<64x64xf32>
    %cst_79 = arith.constant dense<0xFF800000> : vector<64xf32>
    %278 = vector.multi_reduction <maximumf>, %277, %cst_79 [1] : vector<64x64xf32> to vector<64xf32>
    %279 = vector.shape_cast %278 : vector<64xf32> to vector<64x1xf32>
    %280 = vector.broadcast %279 : vector<64x1xf32> to vector<64x64xf32>
    %281 = arith.subf %277, %280 : vector<64x64xf32>
    %282 = math.exp %281 : vector<64x64xf32>
    %cst_80 = arith.constant dense<0.000000e+00> : vector<64xf32>
    %283 = vector.multi_reduction <add>, %282, %cst_80 [1] : vector<64x64xf32> to vector<64xf32>
    %284 = vector.shape_cast %283 : vector<64xf32> to vector<64x1xf32>
    %285 = tpu.reciprocal %284 {approx = true} : vector<64x1xf32> -> vector<64x1xf32>
    %286 = vector.broadcast %285 : vector<64x1xf32> to vector<64x64xf32>
    %287 = arith.mulf %282, %286 : vector<64x64xf32>
    %288 = vector.extract_strided_slice %249 {offsets = [1, 0, 0], sizes = [1, 32, 64], strides = [1, 1, 1]} : vector<2x32x64xbf16> to vector<1x32x64xbf16>
    %289 = vector.shape_cast %288 : vector<1x32x64xbf16> to vector<32x64xbf16>
    %290 = arith.truncf %287 : vector<64x64xf32> to vector<64x64xbf16>
    %cst_81 = arith.constant dense<0.000000e+00> : vector<32x64xf32>
    %291 = tpu.matmul %289, %290, %cst_81 {dimension_numbers = #tpu.dot_dimension_numbers<[1], [1], [0], [0], [0, 0, 1, 0], [], []>} : vector<32x64xbf16>, vector<64x64xbf16>, vector<32x64xf32> -> vector<32x64xf32>
    %292 = vector.shape_cast %270 : vector<32x64xf32> to vector<1x32x64xf32>
    %293 = vector.shape_cast %291 : vector<32x64xf32> to vector<1x32x64xf32>
    %294 = tpu.concatenate %292, %293 in 0 : vector<1x32x64xf32>, vector<1x32x64xf32> -> vector<2x32x64xf32>
    %295 = vector.extract_strided_slice %294 {offsets = [0, 0, 0], sizes = [1, 32, 64], strides = [1, 1, 1]} : vector<2x32x64xf32> to vector<1x32x64xf32>
    %296 = vector.shape_cast %295 : vector<1x32x64xf32> to vector<32x64xf32>
    %297 = vector.extract_strided_slice %175 {offsets = [0, 0, 0], sizes = [1, 8, 64], strides = [1, 1, 1]} : vector<2x8x64xf32> to vector<1x8x64xf32>
    %298 = vector.shape_cast %297 : vector<1x8x64xf32> to vector<8x64xf32>
    %299 = tpu.concatenate %296, %298 in 0 : vector<32x64xf32>, vector<8x64xf32> -> vector<40x64xf32>
    %300 = arith.truncf %299 : vector<40x64xf32> to vector<40x64xbf16>
    %cst_82 = arith.constant dense<0.000000e+00> : vector<8x64xf32>
    %301 = tpu.matmul %5, %300, %cst_82 {dimension_numbers = #tpu.dot_dimension_numbers<[1], [0], [0], [1], [0, 0, 1, 1], [], []>} : vector<8x40xbf16>, vector<40x64xbf16>, vector<8x64xf32> -> vector<8x64xf32>
    %302 = vector.extract_strided_slice %294 {offsets = [1, 0, 0], sizes = [1, 32, 64], strides = [1, 1, 1]} : vector<2x32x64xf32> to vector<1x32x64xf32>
    %303 = vector.shape_cast %302 : vector<1x32x64xf32> to vector<32x64xf32>
    %304 = vector.extract_strided_slice %175 {offsets = [1, 0, 0], sizes = [1, 8, 64], strides = [1, 1, 1]} : vector<2x8x64xf32> to vector<1x8x64xf32>
    %305 = vector.shape_cast %304 : vector<1x8x64xf32> to vector<8x64xf32>
    %306 = tpu.concatenate %303, %305 in 0 : vector<32x64xf32>, vector<8x64xf32> -> vector<40x64xf32>
    %307 = arith.truncf %306 : vector<40x64xf32> to vector<40x64xbf16>
    %cst_83 = arith.constant dense<0.000000e+00> : vector<8x64xf32>
    %308 = tpu.matmul %5, %307, %cst_83 {dimension_numbers = #tpu.dot_dimension_numbers<[1], [0], [0], [1], [0, 0, 1, 1], [], []>} : vector<8x40xbf16>, vector<40x64xbf16>, vector<8x64xf32> -> vector<8x64xf32>
    %309 = vector.shape_cast %301 : vector<8x64xf32> to vector<1x8x64xf32>
    %310 = vector.shape_cast %308 : vector<8x64xf32> to vector<1x8x64xf32>
    %311 = tpu.concatenate %309, %310 in 0 : vector<1x8x64xf32>, vector<1x8x64xf32> -> vector<2x8x64xf32>
    %312 = vector.shape_cast %8 : vector<8x1xf32> to vector<1x8x1xf32>
    %313 = vector.broadcast %312 : vector<1x8x1xf32> to vector<2x8x64xf32>
    %314 = arith.addf %311, %313 : vector<2x8x64xf32>
    %cst_84 = arith.constant dense<0.000000e+00> : vector<8xf32>
    %315 = vector.multi_reduction <add>, %314, %cst_84 [0, 2] : vector<2x8x64xf32> to vector<8xf32>
    %316 = vector.shape_cast %315 : vector<8xf32> to vector<1x8x1xf32>
    %cst_85 = arith.constant 1.280000e+02 : f32
    %317 = vector.broadcast %cst_85 : f32 to vector<1x8x1xf32>
    %318 = arith.divf %316, %317 : vector<1x8x1xf32>
    %319 = vector.broadcast %318 : vector<1x8x1xf32> to vector<2x8x64xf32>
    %320 = arith.subf %314, %319 : vector<2x8x64xf32>
    %321 = arith.mulf %320, %320 : vector<2x8x64xf32>
    %cst_86 = arith.constant dense<0.000000e+00> : vector<8xf32>
    %322 = vector.multi_reduction <add>, %321, %cst_86 [0, 2] : vector<2x8x64xf32> to vector<8xf32>
    %323 = vector.shape_cast %322 : vector<8xf32> to vector<1x8x1xf32>
    %cst_87 = arith.constant 1.280000e+02 : f32
    %324 = vector.broadcast %cst_87 : f32 to vector<1x8x1xf32>
    %325 = arith.divf %323, %324 : vector<1x8x1xf32>
    %326 = vector.broadcast %318 : vector<1x8x1xf32> to vector<2x8x64xf32>
    %327 = arith.subf %314, %326 : vector<2x8x64xf32>
    %328 = vector.shape_cast %11 : vector<8x1xf32> to vector<1x8x1xf32>
    %cst_88 = arith.constant 9.99999974E-6 : f32
    %329 = vector.broadcast %cst_88 : f32 to vector<1x8x1xf32>
    %330 = arith.addf %325, %329 : vector<1x8x1xf32>
    %331 = math.rsqrt %330 : vector<1x8x1xf32>
    %332 = arith.mulf %328, %331 : vector<1x8x1xf32>
    %333 = vector.broadcast %332 : vector<1x8x1xf32> to vector<2x8x64xf32>
    %334 = arith.mulf %327, %333 : vector<2x8x64xf32>
    %335 = vector.shape_cast %12 : vector<8x1xf32> to vector<1x8x1xf32>
    %336 = vector.broadcast %335 : vector<1x8x1xf32> to vector<2x8x64xf32>
    %337 = arith.addf %334, %336 : vector<2x8x64xf32>
    %338 = arith.addf %337, %175 : vector<2x8x64xf32>
    %cst_89 = arith.constant 0.000000e+00 : f32
    %339 = vector.broadcast %cst_89 : f32 to vector<2x8x64xf32>
    %340 = arith.cmpf oge, %338, %339 : vector<2x8x64xf32>
    %cst_90 = arith.constant 0.00999999977 : f32
    %341 = vector.broadcast %cst_90 : f32 to vector<2x8x64xf32>
    %342 = arith.mulf %341, %338 : vector<2x8x64xf32>
    %343 = arith.select %340, %338, %342 : vector<2x8x64xi1>, vector<2x8x64xf32>
    %c0_91 = arith.constant 0 : index
    %c0_92 = arith.constant 0 : index
    %c0_93 = arith.constant 0 : index
    %344 = vector.load %arg13[%c0_91, %c0_92, %c0_93] : memref<2x8x64xf32, #tpu.memory_space<vmem>>, vector<2x8x64xf32>
    tpu.vector_store %arg13[%c0_91, %c0_92, %c0_93], %343 {strides = array<i32>} : memref<2x8x64xf32, #tpu.memory_space<vmem>>, vector<2x8x64xf32>,
    return
  }
}

</mosaic_0001>

<llo_original>
// kernel: tpu_custom_call.1
$region0: #{tpu_custom_call.1}
  #allocation0 [shape = 'u32[]', space=smem, size = 0x4, offset = 0x4, fixed_abs, tag = 'smem constant byte address 0x4 - core index']
  #allocation1 [shape = 'u32[72,128]{1,0:T(1,128)}', space=vmem, size = 0x9000, scoped, tag = 'internal scratch']
  %s0 = inlined_call_operand.vmem [shape: f32[2,8,64], index: 0, kind: input, shape index: {}]
  %s1 = inlined_call_operand.vmem [shape: f32[2,4,64], index: 1, kind: input, shape index: {}]
  %s2 = inlined_call_operand.vmem [shape: f32[2,4,64], index: 2, kind: input, shape index: {}]
  %s3 = inlined_call_operand.vmem [shape: bf16[32,8], index: 3, kind: input, shape index: {}]
  %s4 = inlined_call_operand.vmem [shape: f32[32,1], index: 4, kind: input, shape index: {}]
  %s5 = inlined_call_operand.vmem [shape: bf16[32,4], index: 5, kind: input, shape index: {}]
  %s6 = inlined_call_operand.vmem [shape: f32[32,1], index: 6, kind: input, shape index: {}]
  %s7 = inlined_call_operand.vmem [shape: bf16[8,40], index: 7, kind: input, shape index: {}]
  %s8 = inlined_call_operand.vmem [shape: f32[8,1], index: 8, kind: input, shape index: {}]
  %s9 = inlined_call_operand.vmem [shape: f32[32,1], index: 9, kind: input, shape index: {}]
  %s10 = inlined_call_operand.vmem [shape: f32[32,1], index: 10, kind: input, shape index: {}]
  %s11 = inlined_call_operand.vmem [shape: f32[8,1], index: 11, kind: input, shape index: {}]
  %s12 = inlined_call_operand.vmem [shape: f32[8,1], index: 12, kind: input, shape index: {}]
  %s13 = inlined_call_operand.hbm [shape: f32[2,8,64], index: 13, kind: output, shape index: {}]
  %s14 = sld [smem:[#allocation0]]
  $region62: #{tpu_custom_call.1} parent=0
    _
  %s16 = ssub.s32 1, %s14
  %s17 = scalar_select 0, %s16, %s14
  $region1: #{tpu_custom_call.1} parent=0
    #allocation2 [shape = 'u8[8192]{0}', space=vmem, size = 0x2000, scoped, tag = 'output window, operand 0, single buffered']
    #allocation3 [shape = 's32[1]{0}', space=sflag, size = 0x4, scoped, tag = 'scoped memory for tpu_custom_call.1']
    %18 = vsyncpa [#allocation3], 0
    // Predicated region
    $region2: #{tpu_custom_call.1} parent=1 // pred_check
      _
    $region3: #{tpu_custom_call.1} parent=1 // pred_check_branch
      %20 = sbr.rel (0) target = $region5
    $region4: #{tpu_custom_call.1} parent=1 // pred_region
      _
    $region5: #{tpu_custom_call.1} parent=1 // pred_fallthru
      _
    // Predicated region
    $region6: #{tpu_custom_call.1} parent=1 // pred_check
      _
    $region7: #{tpu_custom_call.1} parent=1 // pred_check_branch
      %22 = sbr.rel (0) target = $region9
    $region8: #{tpu_custom_call.1} parent=1 // pred_region
      _
    $region9: #{tpu_custom_call.1} parent=1 // pred_fallthru
      _
    // Predicated region
    $region10: #{tpu_custom_call.1} parent=1 // pred_check
      _
    $region11: #{tpu_custom_call.1} parent=1 // pred_check_branch
      %24 = sbr.rel (0) target = $region13
    $region12: #{tpu_custom_call.1} parent=1 // pred_region
      _
    $region13: #{tpu_custom_call.1} parent=1 // pred_fallthru
      _
    // Predicated region
    $region14: #{tpu_custom_call.1} parent=1 // pred_check
      _
    $region15: #{tpu_custom_call.1} parent=1 // pred_check_branch
      %26 = sbr.rel (0) target = $region17
    $region16: #{tpu_custom_call.1} parent=1 // pred_region
      _
    $region17: #{tpu_custom_call.1} parent=1 // pred_fallthru
      _
    // Predicated region
    $region18: #{tpu_custom_call.1} parent=1 // pred_check
      _
    $region19: #{tpu_custom_call.1} parent=1 // pred_check_branch
      %28 = sbr.rel (0) target = $region21
    $region20: #{tpu_custom_call.1} parent=1 // pred_region
      _
    $region21: #{tpu_custom_call.1} parent=1 // pred_fallthru
      _
    // Predicated region
    $region22: #{tpu_custom_call.1} parent=1 // pred_check
      _
    $region23: #{tpu_custom_call.1} parent=1 // pred_check_branch
      %30 = sbr.rel (0) target = $region25
    $region24: #{tpu_custom_call.1} parent=1 // pred_region
      _
    $region25: #{tpu_custom_call.1} parent=1 // pred_fallthru
      _
    // Predicated region
    $region26: #{tpu_custom_call.1} parent=1 // pred_check
      _
    $region27: #{tpu_custom_call.1} parent=1 // pred_check_branch
      %32 = sbr.rel (0) target = $region29
    $region28: #{tpu_custom_call.1} parent=1 // pred_region
      _
    $region29: #{tpu_custom_call.1} parent=1 // pred_fallthru
      _
    // Predicated region
    $region30: #{tpu_custom_call.1} parent=1 // pred_check
      _
    $region31: #{tpu_custom_call.1} parent=1 // pred_check_branch
      %34 = sbr.rel (0) target = $region33
    $region32: #{tpu_custom_call.1} parent=1 // pred_region
      _
    $region33: #{tpu_custom_call.1} parent=1 // pred_fallthru
      _
    // Predicated region
    $region34: #{tpu_custom_call.1} parent=1 // pred_check
      _
    $region35: #{tpu_custom_call.1} parent=1 // pred_check_branch
      %36 = sbr.rel (0) target = $region37
    $region36: #{tpu_custom_call.1} parent=1 // pred_region
      _
    $region37: #{tpu_custom_call.1} parent=1 // pred_fallthru
      _
    // Predicated region
    $region38: #{tpu_custom_call.1} parent=1 // pred_check
      _
    $region39: #{tpu_custom_call.1} parent=1 // pred_check_branch
      %38 = sbr.rel (0) target = $region41
    $region40: #{tpu_custom_call.1} parent=1 // pred_region
      _
    $region41: #{tpu_custom_call.1} parent=1 // pred_fallthru
      _
    // Predicated region
    $region42: #{tpu_custom_call.1} parent=1 // pred_check
      _
    $region43: #{tpu_custom_call.1} parent=1 // pred_check_branch
      %40 = sbr.rel (0) target = $region45
    $region44: #{tpu_custom_call.1} parent=1 // pred_region
      _
    $region45: #{tpu_custom_call.1} parent=1 // pred_fallthru
      _
    // Predicated region
    $region46: #{tpu_custom_call.1} parent=1 // pred_check
      _
    $region47: #{tpu_custom_call.1} parent=1 // pred_check_branch
      %42 = sbr.rel (0) target = $region49
    $region48: #{tpu_custom_call.1} parent=1 // pred_region
      _
    $region49: #{tpu_custom_call.1} parent=1 // pred_fallthru
      _
    // Predicated region
    $region50: #{tpu_custom_call.1} parent=1 // pred_check
      _
    $region51: #{tpu_custom_call.1} parent=1 // pred_check_branch
      %44 = sbr.rel (0) target = $region53
    $region52: #{tpu_custom_call.1} parent=1 // pred_region
      _
    $region53: #{tpu_custom_call.1} parent=1 // pred_fallthru
      _
    %v46 = vld [vmem:[%s0] sm:$0xff]
    %v47 = vld [vmem:[%s0 + $0x8] sm:$0xff]
    %v48 = vld [vmem:[%s1] sm:$0xf]
    %v49 = vld [vmem:[%s1 + $0x4] sm:$0xf]
    %v50 = vld [vmem:[%s2] sm:$0xf]
    %v51 = vld [vmem:[%s2 + $0x4] sm:$0xf]
    %v52 = vld [vmem:[%s3] sm:$0xf]
    %v53 = vld [vmem:[%s3 + $0x4] sm:$0xf]
    %v54 = vld [vmem:[%s3 + $0x8] sm:$0xf]
    %v55 = vld [vmem:[%s3 + $0xc] sm:$0xf]
    %v56 = vld [vmem:[%s5] sm:$0xf]
    %v57 = vld [vmem:[%s5 + $0x4] sm:$0xf]
    %v58 = vld [vmem:[%s5 + $0x8] sm:$0xf]
    %v59 = vld [vmem:[%s5 + $0xc] sm:$0xf]
    %v60 = vld [vmem:[%s7] sm:$0xf]
    %v61 = vld [vmem:[%s4] sm:$0xff]
    %v62 = vld [vmem:[%s4 + $0x8] sm:$0xff]
    %v63 = vld [vmem:[%s4 + $0x10] sm:$0xff]
    %v64 = vld [vmem:[%s4 + $0x18] sm:$0xff]
    %v65 = vld [vmem:[%s6] sm:$0xff]
    %v66 = vld [vmem:[%s6 + $0x8] sm:$0xff]
    %v67 = vld [vmem:[%s6 + $0x10] sm:$0xff]
    %v68 = vld [vmem:[%s6 + $0x18] sm:$0xff]
    %v69 = vld [vmem:[%s8] sm:$0xff]
    %v70 = vld [vmem:[%s9] sm:$0xff]
    %v71 = vld [vmem:[%s9 + $0x8] sm:$0xff]
    %v72 = vld [vmem:[%s9 + $0x10] sm:$0xff]
    %v73 = vld [vmem:[%s9 + $0x18] sm:$0xff]
    %v74 = vld [vmem:[%s10] sm:$0xff]
    %v75 = vld [vmem:[%s10 + $0x8] sm:$0xff]
    %v76 = vld [vmem:[%s10 + $0x10] sm:$0xff]
    %v77 = vld [vmem:[%s10 + $0x18] sm:$0xff]
    %v78 = vld [vmem:[%s11] sm:$0xff]
    %v79 = vld [vmem:[%s12] sm:$0xff]
    %v80 = vpack.c.bf16 %v46, %v46
    %v81 = vpack.c.bf16 %v47, %v47
    %v86 = vunpack.c.l.b16 %v52
    %v87 = vunpack.c.l.b16 %v53
    %v88 = vunpack.c.l.b16 %v54
    %v89 = vunpack.c.l.b16 %v55
    %v90 = vpack.c.b16 %v87, %v86
    %v91 = vpack.c.b16 %v89, %v88
    %vm92 = vcmask 64512
    %v94 = vsel %vm92, %v90, 0
    %v97 = vsel %vm92, %v91, 0
    %vm99 = vcmask 1043456
    %v101 = vsel %vm99, %v80, 0
    %103 = vmatpush.bf16.msra.mxu0 0
    %104 = vmatpush.bf16.msra.mxu0 0
    %105 = vmatpush.bf16.msra.mxu0 0
    %106 = vmatpush.bf16.msra.mxu0 0
    %107 = vmatpush.bf16.msra.mxu0 0
    %108 = vmatpush.bf16.msra.mxu0 0
    %109 = vmatpush.bf16.msra.mxu0 0
    %110 = vmatpush.bf16.msra.mxu0 %v101
    %111 = vmatmul.bf16.gmra.mxu0 %v94
    %v112 = vpop.f32.mrf.mxu0
    %v113 = vadd.f32 0.0, %v112
    %v114 = vpop.f32.mrf.mxu0
    %v115 = vadd.f32 0.0, %v114
    %116 = vmatmul.bf16.gmra.mxu0 %v97
    %v117 = vpop.f32.mrf.mxu0
    %v118 = vadd.f32 0.0, %v117
    %v119 = vpop.f32.mrf.mxu0
    %v120 = vadd.f32 0.0, %v119
    %121 = vdwg.mxu0
    %v123 = vsel %vm99, %v81, 0
    %125 = vmatpush.bf16.msra.mxu0 0
    %126 = vmatpush.bf16.msra.mxu0 0
    %127 = vmatpush.bf16.msra.mxu0 0
    %128 = vmatpush.bf16.msra.mxu0 0
    %129 = vmatpush.bf16.msra.mxu0 0
    %130 = vmatpush.bf16.msra.mxu0 0
    %131 = vmatpush.bf16.msra.mxu0 0
    %132 = vmatpush.bf16.msra.mxu0 %v123
    %133 = vmatmul.bf16.gmra.mxu0 %v94
    %v134 = vpop.f32.mrf.mxu0
    %v135 = vadd.f32 0.0, %v134
    %v136 = vpop.f32.mrf.mxu0
    %v137 = vadd.f32 0.0, %v136
    %138 = vmatmul.bf16.gmra.mxu0 %v97
    %v139 = vpop.f32.mrf.mxu0
    %v140 = vadd.f32 0.0, %v139
    %v141 = vpop.f32.mrf.mxu0
    %v142 = vadd.f32 0.0, %v141
    %143 = vdwg.mxu0
    %145 = vset.pattern.permute.xlu0 0
    %146 = vperm.xlu0 %145, %v61
    %v147 = vpop.permute.xlu0 %146
    %150 = vset.pattern.permute.xlu0 0
    %151 = vperm.xlu0 %150, %v62
    %v152 = vpop.permute.xlu0 %151
    %155 = vset.pattern.permute.xlu0 0
    %156 = vperm.xlu0 %155, %v63
    %v157 = vpop.permute.xlu0 %156
    %160 = vset.pattern.permute.xlu0 0
    %161 = vperm.xlu0 %160, %v64
    %v162 = vpop.permute.xlu0 %161
    %v164 = vadd.f32 %v113, %v147
    %v165 = vadd.f32 %v115, %v152
    %v166 = vadd.f32 %v118, %v157
    %v167 = vadd.f32 %v120, %v162
    %v168 = vadd.f32 %v135, %v147
    %v169 = vadd.f32 %v137, %v152
    %v170 = vadd.f32 %v140, %v157
    %v171 = vadd.f32 %v142, %v162
    %vm172 = vcmask 523264
    %v173 = vsel %vm172, %v164, 0.0
    %v174 = vsel %vm172, %v168, 0.0
    %v175 = vadd.f32 %v173, %v174
    %176 = vadd.xlane.f32.xlu0 %v175
    %v177 = vpop.xlane.xlu0 %176
    %v178 = vsel %vm172, %v165, 0.0
    %v179 = vsel %vm172, %v169, 0.0
    %v180 = vadd.f32 %v178, %v179
    %181 = vadd.xlane.f32.xlu0 %v180
    %v182 = vpop.xlane.xlu0 %181
    %v183 = vsel %vm172, %v166, 0.0
    %v184 = vsel %vm172, %v170, 0.0
    %v185 = vadd.f32 %v183, %v184
    %186 = vadd.xlane.f32.xlu0 %v185
    %v187 = vpop.xlane.xlu0 %186
    %v188 = vsel %vm172, %v167, 0.0
    %v189 = vsel %vm172, %v171, 0.0
    %v190 = vadd.f32 %v188, %v189
    %191 = vadd.xlane.f32.xlu0 %v190
    %v192 = vpop.xlane.xlu0 %191
    %v193 = vrcp.pop 128.0
    %v194 = vmul.f32 128.0, %v193
    %v195 = vsub.f32 1.0, %v194
    %v196 = vmul.f32 %v193, %v195
    %v197 = vadd.f32 %v193, %v196
    %vm198 = vweird.f32 %v193
    %v199 = vsel %vm198, %v193, %v197
    %v200 = vmul.f32 %v177, %v199
    %v201 = vmul.f32 %v182, %v199
    %v202 = vmul.f32 %v187, %v199
    %v203 = vmul.f32 %v192, %v199
    %v204 = vsub.f32 %v164, %v200
    %v205 = vsub.f32 %v165, %v201
    %v206 = vsub.f32 %v166, %v202
    %v207 = vsub.f32 %v167, %v203
    %v208 = vsub.f32 %v168, %v200
    %v209 = vsub.f32 %v169, %v201
    %v210 = vsub.f32 %v170, %v202
    %v211 = vsub.f32 %v171, %v203
    %v212 = vmul.f32 %v204, %v204
    %v213 = vmul.f32 %v205, %v205
    %v214 = vmul.f32 %v206, %v206
    %v215 = vmul.f32 %v207, %v207
    %v216 = vmul.f32 %v208, %v208
    %v217 = vmul.f32 %v209, %v209
    %v218 = vmul.f32 %v210, %v210
    %v219 = vmul.f32 %v211, %v211
    %v220 = vsel %vm172, %v212, 0.0
    %v221 = vsel %vm172, %v216, 0.0
    %v222 = vadd.f32 %v220, %v221
    %223 = vadd.xlane.f32.xlu0 %v222
    %v224 = vpop.xlane.xlu0 %223
    %v225 = vsel %vm172, %v213, 0.0
    %v226 = vsel %vm172, %v217, 0.0
    %v227 = vadd.f32 %v225, %v226
    %228 = vadd.xlane.f32.xlu0 %v227
    %v229 = vpop.xlane.xlu0 %228
    %v230 = vsel %vm172, %v214, 0.0
    %v231 = vsel %vm172, %v218, 0.0
    %v232 = vadd.f32 %v230, %v231
    %233 = vadd.xlane.f32.xlu0 %v232
    %v234 = vpop.xlane.xlu0 %233
    %v235 = vsel %vm172, %v215, 0.0
    %v236 = vsel %vm172, %v219, 0.0
    %v237 = vadd.f32 %v235, %v236
    %238 = vadd.xlane.f32.xlu0 %v237
    %v239 = vpop.xlane.xlu0 %238
    %v240 = vmul.f32 %v224, %v199
    %v241 = vmul.f32 %v229, %v199
    %v242 = vmul.f32 %v234, %v199
    %v243 = vmul.f32 %v239, %v199
    %v244 = vadd.f32 %v240, 1e-05
    %v245 = vadd.f32 %v241, 1e-05
    %v246 = vadd.f32 %v242, 1e-05
    %v247 = vadd.f32 %v243, 1e-05
    %v248 = vrsqrt.pop %v244
    %v249 = vmul.f32 %v248, %v244
    %v250 = vmul.f32 %v249, %v248
    %v251 = vmul.f32 0.5, %v250
    %v252 = vsub.f32 1.5, %v251
    %v253 = vmul.f32 %v248, %v252
    %vm254 = vweird.f32 %v244
    %vm255 = vweird.f32 %v248
    %vm256 = vmor %vm254, %vm255
    %v257 = vsel %vm256, %v248, %v253
    %v258 = vrsqrt.pop %v245
    %v259 = vmul.f32 %v258, %v245
    %v260 = vmul.f32 %v259, %v258
    %v261 = vmul.f32 0.5, %v260
    %v262 = vsub.f32 1.5, %v261
    %v263 = vmul.f32 %v258, %v262
    %vm264 = vweird.f32 %v245
    %vm265 = vweird.f32 %v258
    %vm266 = vmor %vm264, %vm265
    %v267 = vsel %vm266, %v258, %v263
    %v268 = vrsqrt.pop %v246
    %v269 = vmul.f32 %v268, %v246
    %v270 = vmul.f32 %v269, %v268
    %v271 = vmul.f32 0.5, %v270
    %v272 = vsub.f32 1.5, %v271
    %v273 = vmul.f32 %v268, %v272
    %vm274 = vweird.f32 %v246
    %vm275 = vweird.f32 %v268
    %vm276 = vmor %vm274, %vm275
    %v277 = vsel %vm276, %v268, %v273
    %v278 = vrsqrt.pop %v247
    %v279 = vmul.f32 %v278, %v247
    %v280 = vmul.f32 %v279, %v278
    %v281 = vmul.f32 0.5, %v280
    %v282 = vsub.f32 1.5, %v281
    %v283 = vmul.f32 %v278, %v282
    %vm284 = vweird.f32 %v247
    %vm285 = vweird.f32 %v278
    %vm286 = vmor %vm284, %vm285
    %v287 = vsel %vm286, %v278, %v283
    %v288 = vmul.f32 %v70, %v257
    %v289 = vmul.f32 %v71, %v267
    %v290 = vmul.f32 %v72, %v277
    %v291 = vmul.f32 %v73, %v287
    %293 = vset.pattern.permute.xlu0 0
    %294 = vperm.xlu0 %293, %v288
    %v295 = vpop.permute.xlu0 %294
    %298 = vset.pattern.permute.xlu0 0
    %299 = vperm.xlu0 %298, %v289
    %v300 = vpop.permute.xlu0 %299
    %303 = vset.pattern.permute.xlu0 0
    %304 = vperm.xlu0 %303, %v290
    %v305 = vpop.permute.xlu0 %304
    %308 = vset.pattern.permute.xlu0 0
    %309 = vperm.xlu0 %308, %v291
    %v310 = vpop.permute.xlu0 %309
    %v312 = vmul.f32 %v204, %v295
    %v313 = vmul.f32 %v205, %v300
    %v314 = vmul.f32 %v206, %v305
    %v315 = vmul.f32 %v207, %v310
    %v316 = vmul.f32 %v208, %v295
    %v317 = vmul.f32 %v209, %v300
    %v318 = vmul.f32 %v210, %v305
    %v319 = vmul.f32 %v211, %v310
    %321 = vset.pattern.permute.xlu0 0
    %322 = vperm.xlu0 %321, %v74
    %v323 = vpop.permute.xlu0 %322
    %326 = vset.pattern.permute.xlu0 0
    %327 = vperm.xlu0 %326, %v75
    %v328 = vpop.permute.xlu0 %327
    %331 = vset.pattern.permute.xlu0 0
    %332 = vperm.xlu0 %331, %v76
    %v333 = vpop.permute.xlu0 %332
    %336 = vset.pattern.permute.xlu0 0
    %337 = vperm.xlu0 %336, %v77
    %v338 = vpop.permute.xlu0 %337
    %v340 = vadd.f32 %v312, %v323
    %v341 = vadd.f32 %v313, %v328
    %v342 = vadd.f32 %v314, %v333
    %v343 = vadd.f32 %v315, %v338
    %v344 = vadd.f32 %v316, %v323
    %v345 = vadd.f32 %v317, %v328
    %v346 = vadd.f32 %v318, %v333
    %v347 = vadd.f32 %v319, %v338
    %v348 = vpack.c.bf16 %v48, %v48
    %v349 = vpack.c.bf16 %v49, %v49
    %v354 = vunpack.c.l.b16 %v56
    %v355 = vunpack.c.l.b16 %v57
    %v356 = vunpack.c.l.b16 %v58
    %v357 = vunpack.c.l.b16 %v59
    %v358 = vpack.c.b16 %v355, %v354
    %v359 = vpack.c.b16 %v357, %v356
    %vm360 = vcmask 31744
    %v362 = vsel %vm360, %v358, 0
    %v365 = vsel %vm360, %v359, 0
    %vm367 = vcmask 1041408
    %v369 = vsel %vm367, %v348, 0
    %371 = vmatpush.bf16.msra.mxu0 0
    %372 = vmatpush.bf16.msra.mxu0 0
    %373 = vmatpush.bf16.msra.mxu0 0
    %374 = vmatpush.bf16.msra.mxu0 0
    %375 = vmatpush.bf16.msra.mxu0 0
    %376 = vmatpush.bf16.msra.mxu0 0
    %377 = vmatpush.bf16.msra.mxu0 0
    %378 = vmatpush.bf16.msra.mxu0 %v369
    %379 = vmatmul.bf16.gmra.mxu0 %v362
    %v380 = vpop.f32.mrf.mxu0
    %v381 = vadd.f32 0.0, %v380
    %v382 = vpop.f32.mrf.mxu0
    %v383 = vadd.f32 0.0, %v382
    %384 = vmatmul.bf16.gmra.mxu0 %v365
    %v385 = vpop.f32.mrf.mxu0
    %v386 = vadd.f32 0.0, %v385
    %v387 = vpop.f32.mrf.mxu0
    %v388 = vadd.f32 0.0, %v387
    %389 = vdwg.mxu0
    %v391 = vsel %vm367, %v349, 0
    %393 = vmatpush.bf16.msra.mxu0 0
    %394 = vmatpush.bf16.msra.mxu0 0
    %395 = vmatpush.bf16.msra.mxu0 0
    %396 = vmatpush.bf16.msra.mxu0 0
    %397 = vmatpush.bf16.msra.mxu0 0
    %398 = vmatpush.bf16.msra.mxu0 0
    %399 = vmatpush.bf16.msra.mxu0 0
    %400 = vmatpush.bf16.msra.mxu0 %v391
    %401 = vmatmul.bf16.gmra.mxu0 %v362
    %v402 = vpop.f32.mrf.mxu0
    %v403 = vadd.f32 0.0, %v402
    %v404 = vpop.f32.mrf.mxu0
    %v405 = vadd.f32 0.0, %v404
    %406 = vmatmul.bf16.gmra.mxu0 %v365
    %v407 = vpop.f32.mrf.mxu0
    %v408 = vadd.f32 0.0, %v407
    %v409 = vpop.f32.mrf.mxu0
    %v410 = vadd.f32 0.0, %v409
    %411 = vdwg.mxu0
    %413 = vset.pattern.permute.xlu0 0
    %414 = vperm.xlu0 %413, %v65
    %v415 = vpop.permute.xlu0 %414
    %418 = vset.pattern.permute.xlu0 0
    %419 = vperm.xlu0 %418, %v66
    %v420 = vpop.permute.xlu0 %419
    %423 = vset.pattern.permute.xlu0 0
    %424 = vperm.xlu0 %423, %v67
    %v425 = vpop.permute.xlu0 %424
    %428 = vset.pattern.permute.xlu0 0
    %429 = vperm.xlu0 %428, %v68
    %v430 = vpop.permute.xlu0 %429
    %v432 = vadd.f32 %v381, %v415
    %v433 = vadd.f32 %v383, %v420
    %v434 = vadd.f32 %v386, %v425
    %v435 = vadd.f32 %v388, %v430
    %v436 = vadd.f32 %v403, %v415
    %v437 = vadd.f32 %v405, %v420
    %v438 = vadd.f32 %v408, %v425
    %v439 = vadd.f32 %v410, %v430
    %v440 = vsel %vm172, %v432, 0.0
    %v441 = vsel %vm172, %v436, 0.0
    %v442 = vadd.f32 %v440, %v441
    %443 = vadd.xlane.f32.xlu0 %v442
    %v444 = vpop.xlane.xlu0 %443
    %v445 = vsel %vm172, %v433, 0.0
    %v446 = vsel %vm172, %v437, 0.0
    %v447 = vadd.f32 %v445, %v446
    %448 = vadd.xlane.f32.xlu0 %v447
    %v449 = vpop.xlane.xlu0 %448
    %v450 = vsel %vm172, %v434, 0.0
    %v451 = vsel %vm172, %v438, 0.0
    %v452 = vadd.f32 %v450, %v451
    %453 = vadd.xlane.f32.xlu0 %v452
    %v454 = vpop.xlane.xlu0 %453
    %v455 = vsel %vm172, %v435, 0.0
    %v456 = vsel %vm172, %v439, 0.0
    %v457 = vadd.f32 %v455, %v456
    %458 = vadd.xlane.f32.xlu0 %v457
    %v459 = vpop.xlane.xlu0 %458
    %v460 = vmul.f32 %v444, %v199
    %v461 = vmul.f32 %v449, %v199
    %v462 = vmul.f32 %v454, %v199
    %v463 = vmul.f32 %v459, %v199
    %v464 = vsub.f32 %v432, %v460
    %v465 = vsub.f32 %v433, %v461
    %v466 = vsub.f32 %v434, %v462
    %v467 = vsub.f32 %v435, %v463
    %v468 = vsub.f32 %v436, %v460
    %v469 = vsub.f32 %v437, %v461
    %v470 = vsub.f32 %v438, %v462
    %v471 = vsub.f32 %v439, %v463
    %v472 = vmul.f32 %v464, %v464
    %v473 = vmul.f32 %v465, %v465
    %v474 = vmul.f32 %v466, %v466
    %v475 = vmul.f32 %v467, %v467
    %v476 = vmul.f32 %v468, %v468
    %v477 = vmul.f32 %v469, %v469
    %v478 = vmul.f32 %v470, %v470
    %v479 = vmul.f32 %v471, %v471
    %v480 = vsel %vm172, %v472, 0.0
    %v481 = vsel %vm172, %v476, 0.0
    %v482 = vadd.f32 %v480, %v481
    %483 = vadd.xlane.f32.xlu0 %v482
    %v484 = vpop.xlane.xlu0 %483
    %v485 = vsel %vm172, %v473, 0.0
    %v486 = vsel %vm172, %v477, 0.0
    %v487 = vadd.f32 %v485, %v486
    %488 = vadd.xlane.f32.xlu0 %v487
    %v489 = vpop.xlane.xlu0 %488
    %v490 = vsel %vm172, %v474, 0.0
    %v491 = vsel %vm172, %v478, 0.0
    %v492 = vadd.f32 %v490, %v491
    %493 = vadd.xlane.f32.xlu0 %v492
    %v494 = vpop.xlane.xlu0 %493
    %v495 = vsel %vm172, %v475, 0.0
    %v496 = vsel %vm172, %v479, 0.0
    %v497 = vadd.f32 %v495, %v496
    %498 = vadd.xlane.f32.xlu0 %v497
    %v499 = vpop.xlane.xlu0 %498
    %v500 = vmul.f32 %v484, %v199
    %v501 = vmul.f32 %v489, %v199
    %v502 = vmul.f32 %v494, %v199
    %v503 = vmul.f32 %v499, %v199
    %v504 = vadd.f32 %v500, 1e-05
    %v505 = vadd.f32 %v501, 1e-05
    %v506 = vadd.f32 %v502, 1e-05
    %v507 = vadd.f32 %v503, 1e-05
    %v508 = vrsqrt.pop %v504
    %v509 = vmul.f32 %v508, %v504
    %v510 = vmul.f32 %v509, %v508
    %v511 = vmul.f32 0.5, %v510
    %v512 = vsub.f32 1.5, %v511
    %v513 = vmul.f32 %v508, %v512
    %vm514 = vweird.f32 %v504
    %vm515 = vweird.f32 %v508
    %vm516 = vmor %vm514, %vm515
    %v517 = vsel %vm516, %v508, %v513
    %v518 = vrsqrt.pop %v505
    %v519 = vmul.f32 %v518, %v505
    %v520 = vmul.f32 %v519, %v518
    %v521 = vmul.f32 0.5, %v520
    %v522 = vsub.f32 1.5, %v521
    %v523 = vmul.f32 %v518, %v522
    %vm524 = vweird.f32 %v505
    %vm525 = vweird.f32 %v518
    %vm526 = vmor %vm524, %vm525
    %v527 = vsel %vm526, %v518, %v523
    %v528 = vrsqrt.pop %v506
    %v529 = vmul.f32 %v528, %v506
    %v530 = vmul.f32 %v529, %v528
    %v531 = vmul.f32 0.5, %v530
    %v532 = vsub.f32 1.5, %v531
    %v533 = vmul.f32 %v528, %v532
    %vm534 = vweird.f32 %v506
    %vm535 = vweird.f32 %v528
    %vm536 = vmor %vm534, %vm535
    %v537 = vsel %vm536, %v528, %v533
    %v538 = vrsqrt.pop %v507
    %v539 = vmul.f32 %v538, %v507
    %v540 = vmul.f32 %v539, %v538
    %v541 = vmul.f32 0.5, %v540
    %v542 = vsub.f32 1.5, %v541
    %v543 = vmul.f32 %v538, %v542
    %vm544 = vweird.f32 %v507
    %vm545 = vweird.f32 %v538
    %vm546 = vmor %vm544, %vm545
    %v547 = vsel %vm546, %v538, %v543
    %v548 = vmul.f32 %v70, %v517
    %v549 = vmul.f32 %v71, %v527
    %v550 = vmul.f32 %v72, %v537
    %v551 = vmul.f32 %v73, %v547
    %553 = vset.pattern.permute.xlu0 0
    %554 = vperm.xlu0 %553, %v548
    %v555 = vpop.permute.xlu0 %554
    %558 = vset.pattern.permute.xlu0 0
    %559 = vperm.xlu0 %558, %v549
    %v560 = vpop.permute.xlu0 %559
    %563 = vset.pattern.permute.xlu0 0
    %564 = vperm.xlu0 %563, %v550
    %v565 = vpop.permute.xlu0 %564
    %568 = vset.pattern.permute.xlu0 0
    %569 = vperm.xlu0 %568, %v551
    %v570 = vpop.permute.xlu0 %569
    %v572 = vmul.f32 %v464, %v555
    %v573 = vmul.f32 %v465, %v560
    %v574 = vmul.f32 %v466, %v565
    %v575 = vmul.f32 %v467, %v570
    %v576 = vmul.f32 %v468, %v555
    %v577 = vmul.f32 %v469, %v560
    %v578 = vmul.f32 %v470, %v565
    %v579 = vmul.f32 %v471, %v570
    %v580 = vadd.f32 %v572, %v323
    %v581 = vadd.f32 %v573, %v328
    %v582 = vadd.f32 %v574, %v333
    %v583 = vadd.f32 %v575, %v338
    %v584 = vadd.f32 %v576, %v323
    %v585 = vadd.f32 %v577, %v328
    %v586 = vadd.f32 %v578, %v333
    %v587 = vadd.f32 %v579, %v338
    %v588 = vpack.c.bf16 %v340, %v340
    %v589 = vpack.c.bf16 %v341, %v341
    %v590 = vpack.c.bf16 %v342, %v342
    %v591 = vpack.c.bf16 %v343, %v343
    %v592 = vpack.c.bf16 %v344, %v344
    %v593 = vpack.c.bf16 %v345, %v345
    %v594 = vpack.c.bf16 %v346, %v346
    %v595 = vpack.c.bf16 %v347, %v347
    %v596 = vpack.c.bf16 %v580, %v580
    %v597 = vpack.c.bf16 %v581, %v581
    %v598 = vpack.c.bf16 %v582, %v582
    %v599 = vpack.c.bf16 %v583, %v583
    %v600 = vpack.c.bf16 %v584, %v584
    %v601 = vpack.c.bf16 %v585, %v585
    %v602 = vpack.c.bf16 %v586, %v586
    %v603 = vpack.c.bf16 %v587, %v587
    %v608 = vunpack.c.l.b16 %v588
    %v609 = vunpack.c.l.b16 %v589
    %v610 = vunpack.c.l.b16 %v590
    %v611 = vunpack.c.l.b16 %v591
    %v612 = vpack.c.b16 %v609, %v608
    %v613 = vpack.c.b16 %v611, %v610
    %616 = vxpose.xlu0.c.b16.start [1/8] %v612, 128
    %617 = vxpose.xlu0.c.b16.cont [2/8] %v613, 128
    %618 = vxpose.xlu0.c.b16.cont [3/8] 0, 128
    %619 = vxpose.xlu0.c.b16.cont [4/8] 0, 128
    %620 = vxpose.xlu0.c.b16.cont [5/8] 0, 128
    %621 = vxpose.xlu0.c.b16.cont [6/8] 0, 128
    %622 = vxpose.xlu0.c.b16.cont [7/8] 0, 128
    %623 = vxpose.xlu0.c.b16.end [8/8] 0, 128
    %v624 = vpop.trf.xlu0
    %v625 = vpop.trf.xlu0
    %v626 = vpop.trf.xlu0
    %v627 = vpop.trf.xlu0
    %v628 = vpop.trf.xlu0
    %v629 = vpop.trf.xlu0
    %v630 = vpop.trf.xlu0
    %v631 = vpop.trf.xlu0
    %v636 = vunpack.c.l.b16 %v596
    %v637 = vunpack.c.l.b16 %v597
    %v638 = vunpack.c.l.b16 %v598
    %v639 = vunpack.c.l.b16 %v599
    %v640 = vpack.c.b16 %v637, %v636
    %v641 = vpack.c.b16 %v639, %v638
    %vm644 = vcmask 261120
    %v646 = vsel %vm644, %v624, 0
    %v649 = vsel %vm644, %v625, 0
    %v652 = vsel %vm644, %v626, 0
    %v655 = vsel %vm644, %v627, 0
    %657 = vmatpush.bf16.msra.mxu0 0
    %658 = vmatpush.bf16.msra.mxu0 0
    %659 = vmatpush.bf16.msra.mxu0 0
    %660 = vmatpush.bf16.msra.mxu0 0
    %661 = vmatpush.bf16.msra.mxu0 0
    %662 = vmatpush.bf16.msra.mxu0 0
    %663 = vmatpush.bf16.msra.mxu0 %v641
    %664 = vmatpush.bf16.msra.mxu0 %v640
    %665 = vmatmul.bf16.gmra.mxu0 %v646
    %v666 = vpop.f32.mrf.mxu0
    %v667 = vadd.f32 0.0, %v666
    %v668 = vpop.f32.mrf.mxu0
    %v669 = vadd.f32 0.0, %v668
    %670 = vmatmul.bf16.gmra.mxu0 %v649
    %v671 = vpop.f32.mrf.mxu0
    %v672 = vadd.f32 0.0, %v671
    %v673 = vpop.f32.mrf.mxu0
    %v674 = vadd.f32 0.0, %v673
    %675 = vmatmul.bf16.gmra.mxu0 %v652
    %v676 = vpop.f32.mrf.mxu0
    %v677 = vadd.f32 0.0, %v676
    %v678 = vpop.f32.mrf.mxu0
    %v679 = vadd.f32 0.0, %v678
    %680 = vmatmul.bf16.gmra.mxu0 %v655
    %v681 = vpop.f32.mrf.mxu0
    %v682 = vadd.f32 0.0, %v681
    %v683 = vpop.f32.mrf.mxu0
    %v684 = vadd.f32 0.0, %v683
    %685 = vdwg.mxu0
    %v686 = vmul.f32 %v667, 0.17677669
    %v687 = vmul.f32 %v669, 0.17677669
    %v688 = vmul.f32 %v672, 0.17677669
    %v689 = vmul.f32 %v674, 0.17677669
    %v690 = vmul.f32 %v677, 0.17677669
    %v691 = vmul.f32 %v679, 0.17677669
    %v692 = vmul.f32 %v682, 0.17677669
    %v693 = vmul.f32 %v684, 0.17677669
    %v694 = vsel %vm172, %v686, -inf
    %695 = vmax.xlane.f32.xlu0 %v694
    %v696 = vpop.xlane.xlu0 %695
    %v697 = vsel %vm172, %v687, -inf
    %698 = vmax.xlane.f32.xlu0 %v697
    %v699 = vpop.xlane.xlu0 %698
    %v700 = vsel %vm172, %v688, -inf
    %701 = vmax.xlane.f32.xlu0 %v700
    %v702 = vpop.xlane.xlu0 %701
    %v703 = vsel %vm172, %v689, -inf
    %704 = vmax.xlane.f32.xlu0 %v703
    %v705 = vpop.xlane.xlu0 %704
    %v706 = vsel %vm172, %v690, -inf
    %707 = vmax.xlane.f32.xlu0 %v706
    %v708 = vpop.xlane.xlu0 %707
    %v709 = vsel %vm172, %v691, -inf
    %710 = vmax.xlane.f32.xlu0 %v709
    %v711 = vpop.xlane.xlu0 %710
    %v712 = vsel %vm172, %v692, -inf
    %713 = vmax.xlane.f32.xlu0 %v712
    %v714 = vpop.xlane.xlu0 %713
    %v715 = vsel %vm172, %v693, -inf
    %716 = vmax.xlane.f32.xlu0 %v715
    %v717 = vpop.xlane.xlu0 %716
    %v718 = vsub.f32 %v686, %v696
    %v719 = vsub.f32 %v687, %v699
    %v720 = vsub.f32 %v688, %v702
    %v721 = vsub.f32 %v689, %v705
    %v722 = vsub.f32 %v690, %v708
    %v723 = vsub.f32 %v691, %v711
    %v724 = vsub.f32 %v692, %v714
    %v725 = vsub.f32 %v693, %v717
    %v726 = vmul.f32 %v718, 1.442695
    %v727 = vpow.pop %v726
    %v728 = vmul.f32 %v719, 1.442695
    %v729 = vpow.pop %v728
    %v730 = vmul.f32 %v720, 1.442695
    %v731 = vpow.pop %v730
    %v732 = vmul.f32 %v721, 1.442695
    %v733 = vpow.pop %v732
    %v734 = vmul.f32 %v722, 1.442695
    %v735 = vpow.pop %v734
    %v736 = vmul.f32 %v723, 1.442695
    %v737 = vpow.pop %v736
    %v738 = vmul.f32 %v724, 1.442695
    %v739 = vpow.pop %v738
    %v740 = vmul.f32 %v725, 1.442695
    %v741 = vpow.pop %v740
    %v742 = vsel %vm172, %v727, 0.0
    %743 = vadd.xlane.f32.xlu0 %v742
    %v744 = vpop.xlane.xlu0 %743
    %v745 = vsel %vm172, %v729, 0.0
    %746 = vadd.xlane.f32.xlu0 %v745
    %v747 = vpop.xlane.xlu0 %746
    %v748 = vsel %vm172, %v731, 0.0
    %749 = vadd.xlane.f32.xlu0 %v748
    %v750 = vpop.xlane.xlu0 %749
    %v751 = vsel %vm172, %v733, 0.0
    %752 = vadd.xlane.f32.xlu0 %v751
    %v753 = vpop.xlane.xlu0 %752
    %v754 = vsel %vm172, %v735, 0.0
    %755 = vadd.xlane.f32.xlu0 %v754
    %v756 = vpop.xlane.xlu0 %755
    %v757 = vsel %vm172, %v737, 0.0
    %758 = vadd.xlane.f32.xlu0 %v757
    %v759 = vpop.xlane.xlu0 %758
    %v760 = vsel %vm172, %v739, 0.0
    %761 = vadd.xlane.f32.xlu0 %v760
    %v762 = vpop.xlane.xlu0 %761
    %v763 = vsel %vm172, %v741, 0.0
    %764 = vadd.xlane.f32.xlu0 %v763
    %v765 = vpop.xlane.xlu0 %764
    %v766 = vrcp.pop %v744
    %v767 = vrcp.pop %v747
    %v768 = vrcp.pop %v750
    %v769 = vrcp.pop %v753
    %v770 = vrcp.pop %v756
    %v771 = vrcp.pop %v759
    %v772 = vrcp.pop %v762
    %v773 = vrcp.pop %v765
    %v774 = vmul.f32 %v727, %v766
    %v775 = vmul.f32 %v729, %v767
    %v776 = vmul.f32 %v731, %v768
    %v777 = vmul.f32 %v733, %v769
    %v778 = vmul.f32 %v735, %v770
    %v779 = vmul.f32 %v737, %v771
    %v780 = vmul.f32 %v739, %v772
    %v781 = vmul.f32 %v741, %v773
    %v782 = vpack.c.bf16 %v775, %v774
    %v783 = vpack.c.bf16 %v777, %v776
    %v784 = vpack.c.bf16 %v779, %v778
    %v785 = vpack.c.bf16 %v781, %v780
    %v787 = vsel %vm172, %v640, 0
    %v790 = vsel %vm172, %v641, 0
    %v793 = vsel %vm172, %v782, 0
    %v796 = vsel %vm172, %v783, 0
    %v799 = vsel %vm172, %v784, 0
    %v802 = vsel %vm172, %v785, 0
    %804 = vmatpush.bf16.xpose.msra.mxu0 0
    %805 = vmatpush.bf16.xpose.msra.mxu0 0
    %806 = vmatpush.bf16.xpose.msra.mxu0 0
    %807 = vmatpush.bf16.xpose.msra.mxu0 0
    %808 = vmatpush.bf16.xpose.msra.mxu0 %v802
    %809 = vmatpush.bf16.xpose.msra.mxu0 %v799
    %810 = vmatpush.bf16.xpose.msra.mxu0 %v796
    %811 = vmatpush.bf16.xpose.msra.mxu0 %v793
    %812 = vmatmul.bf16.gmra.mxu0 %v787
    %v813 = vpop.f32.mrf.mxu0
    %v814 = vadd.f32 0.0, %v813
    %v815 = vpop.f32.mrf.mxu0
    %v816 = vadd.f32 0.0, %v815
    %817 = vmatmul.bf16.gmra.mxu0 %v790
    %v818 = vpop.f32.mrf.mxu0
    %v819 = vadd.f32 0.0, %v818
    %v820 = vpop.f32.mrf.mxu0
    %v821 = vadd.f32 0.0, %v820
    %822 = vdwg.mxu0
    %v827 = vunpack.c.l.b16 %v592
    %v828 = vunpack.c.l.b16 %v593
    %v829 = vunpack.c.l.b16 %v594
    %v830 = vunpack.c.l.b16 %v595
    %v831 = vpack.c.b16 %v828, %v827
    %v832 = vpack.c.b16 %v830, %v829
    %835 = vxpose.xlu0.c.b16.start [1/8] %v831, 128
    %836 = vxpose.xlu0.c.b16.cont [2/8] %v832, 128
    %837 = vxpose.xlu0.c.b16.cont [3/8] 0, 128
    %838 = vxpose.xlu0.c.b16.cont [4/8] 0, 128
    %839 = vxpose.xlu0.c.b16.cont [5/8] 0, 128
    %840 = vxpose.xlu0.c.b16.cont [6/8] 0, 128
    %841 = vxpose.xlu0.c.b16.cont [7/8] 0, 128
    %842 = vxpose.xlu0.c.b16.end [8/8] 0, 128
    %v843 = vpop.trf.xlu0
    %v844 = vpop.trf.xlu0
    %v845 = vpop.trf.xlu0
    %v846 = vpop.trf.xlu0
    %v847 = vpop.trf.xlu0
    %v848 = vpop.trf.xlu0
    %v849 = vpop.trf.xlu0
    %v850 = vpop.trf.xlu0
    %v855 = vunpack.c.l.b16 %v600
    %v856 = vunpack.c.l.b16 %v601
    %v857 = vunpack.c.l.b16 %v602
    %v858 = vunpack.c.l.b16 %v603
    %v859 = vpack.c.b16 %v856, %v855
    %v860 = vpack.c.b16 %v858, %v857
    %v864 = vsel %vm644, %v843, 0
    %v867 = vsel %vm644, %v844, 0
    %v870 = vsel %vm644, %v845, 0
    %v873 = vsel %vm644, %v846, 0
    %875 = vmatpush.bf16.msra.mxu0 0
    %876 = vmatpush.bf16.msra.mxu0 0
    %877 = vmatpush.bf16.msra.mxu0 0
    %878 = vmatpush.bf16.msra.mxu0 0
    %879 = vmatpush.bf16.msra.mxu0 0
    %880 = vmatpush.bf16.msra.mxu0 0
    %881 = vmatpush.bf16.msra.mxu0 %v860
    %882 = vmatpush.bf16.msra.mxu0 %v859
    %883 = vmatmul.bf16.gmra.mxu0 %v864
    %v884 = vpop.f32.mrf.mxu0
    %v885 = vadd.f32 0.0, %v884
    %v886 = vpop.f32.mrf.mxu0
    %v887 = vadd.f32 0.0, %v886
    %888 = vmatmul.bf16.gmra.mxu0 %v867
    %v889 = vpop.f32.mrf.mxu0
    %v890 = vadd.f32 0.0, %v889
    %v891 = vpop.f32.mrf.mxu0
    %v892 = vadd.f32 0.0, %v891
    %893 = vmatmul.bf16.gmra.mxu0 %v870
    %v894 = vpop.f32.mrf.mxu0
    %v895 = vadd.f32 0.0, %v894
    %v896 = vpop.f32.mrf.mxu0
    %v897 = vadd.f32 0.0, %v896
    %898 = vmatmul.bf16.gmra.mxu0 %v873
    %v899 = vpop.f32.mrf.mxu0
    %v900 = vadd.f32 0.0, %v899
    %v901 = vpop.f32.mrf.mxu0
    %v902 = vadd.f32 0.0, %v901
    %903 = vdwg.mxu0
    %v904 = vmul.f32 %v885, 0.17677669
    %v905 = vmul.f32 %v887, 0.17677669
    %v906 = vmul.f32 %v890, 0.17677669
    %v907 = vmul.f32 %v892, 0.17677669
    %v908 = vmul.f32 %v895, 0.17677669
    %v909 = vmul.f32 %v897, 0.17677669
    %v910 = vmul.f32 %v900, 0.17677669
    %v911 = vmul.f32 %v902, 0.17677669
    %v912 = vsel %vm172, %v904, -inf
    %913 = vmax.xlane.f32.xlu0 %v912
    %v914 = vpop.xlane.xlu0 %913
    %v915 = vsel %vm172, %v905, -inf
    %916 = vmax.xlane.f32.xlu0 %v915
    %v917 = vpop.xlane.xlu0 %916
    %v918 = vsel %vm172, %v906, -inf
    %919 = vmax.xlane.f32.xlu0 %v918
    %v920 = vpop.xlane.xlu0 %919
    %v921 = vsel %vm172, %v907, -inf
    %922 = vmax.xlane.f32.xlu0 %v921
    %v923 = vpop.xlane.xlu0 %922
    %v924 = vsel %vm172, %v908, -inf
    %925 = vmax.xlane.f32.xlu0 %v924
    %v926 = vpop.xlane.xlu0 %925
    %v927 = vsel %vm172, %v909, -inf
    %928 = vmax.xlane.f32.xlu0 %v927
    %v929 = vpop.xlane.xlu0 %928
    %v930 = vsel %vm172, %v910, -inf
    %931 = vmax.xlane.f32.xlu0 %v930
    %v932 = vpop.xlane.xlu0 %931
    %v933 = vsel %vm172, %v911, -inf
    %934 = vmax.xlane.f32.xlu0 %v933
    %v935 = vpop.xlane.xlu0 %934
    %v936 = vsub.f32 %v904, %v914
    %v937 = vsub.f32 %v905, %v917
    %v938 = vsub.f32 %v906, %v920
    %v939 = vsub.f32 %v907, %v923
    %v940 = vsub.f32 %v908, %v926
    %v941 = vsub.f32 %v909, %v929
    %v942 = vsub.f32 %v910, %v932
    %v943 = vsub.f32 %v911, %v935
    %v944 = vmul.f32 %v936, 1.442695
    %v945 = vpow.pop %v944
    %v946 = vmul.f32 %v937, 1.442695
    %v947 = vpow.pop %v946
    %v948 = vmul.f32 %v938, 1.442695
    %v949 = vpow.pop %v948
    %v950 = vmul.f32 %v939, 1.442695
    %v951 = vpow.pop %v950
    %v952 = vmul.f32 %v940, 1.442695
    %v953 = vpow.pop %v952
    %v954 = vmul.f32 %v941, 1.442695
    %v955 = vpow.pop %v954
    %v956 = vmul.f32 %v942, 1.442695
    %v957 = vpow.pop %v956
    %v958 = vmul.f32 %v943, 1.442695
    %v959 = vpow.pop %v958
    %v960 = vsel %vm172, %v945, 0.0
    %961 = vadd.xlane.f32.xlu0 %v960
    %v962 = vpop.xlane.xlu0 %961
    %v963 = vsel %vm172, %v947, 0.0
    %964 = vadd.xlane.f32.xlu0 %v963
    %v965 = vpop.xlane.xlu0 %964
    %v966 = vsel %vm172, %v949, 0.0
    %967 = vadd.xlane.f32.xlu0 %v966
    %v968 = vpop.xlane.xlu0 %967
    %v969 = vsel %vm172, %v951, 0.0
    %970 = vadd.xlane.f32.xlu0 %v969
    %v971 = vpop.xlane.xlu0 %970
    %v972 = vsel %vm172, %v953, 0.0
    %973 = vadd.xlane.f32.xlu0 %v972
    %v974 = vpop.xlane.xlu0 %973
    %v975 = vsel %vm172, %v955, 0.0
    %976 = vadd.xlane.f32.xlu0 %v975
    %v977 = vpop.xlane.xlu0 %976
    %v978 = vsel %vm172, %v957, 0.0
    %979 = vadd.xlane.f32.xlu0 %v978
    %v980 = vpop.xlane.xlu0 %979
    %v981 = vsel %vm172, %v959, 0.0
    %982 = vadd.xlane.f32.xlu0 %v981
    %v983 = vpop.xlane.xlu0 %982
    %v984 = vrcp.pop %v962
    %v985 = vrcp.pop %v965
    %v986 = vrcp.pop %v968
    %v987 = vrcp.pop %v971
    %v988 = vrcp.pop %v974
    %v989 = vrcp.pop %v977
    %v990 = vrcp.pop %v980
    %v991 = vrcp.pop %v983
    %v992 = vmul.f32 %v945, %v984
    %v993 = vmul.f32 %v947, %v985
    %v994 = vmul.f32 %v949, %v986
    %v995 = vmul.f32 %v951, %v987
    %v996 = vmul.f32 %v953, %v988
    %v997 = vmul.f32 %v955, %v989
    %v998 = vmul.f32 %v957, %v990
    %v999 = vmul.f32 %v959, %v991
    %v1000 = vpack.c.bf16 %v993, %v992
    %v1001 = vpack.c.bf16 %v995, %v994
    %v1002 = vpack.c.bf16 %v997, %v996
    %v1003 = vpack.c.bf16 %v999, %v998
    %v1005 = vsel %vm172, %v859, 0
    %v1008 = vsel %vm172, %v860, 0
    %v1011 = vsel %vm172, %v1000, 0
    %v1014 = vsel %vm172, %v1001, 0
    %v1017 = vsel %vm172, %v1002, 0
    %v1020 = vsel %vm172, %v1003, 0
    %1022 = vmatpush.bf16.xpose.msra.mxu0 0
    %1023 = vmatpush.bf16.xpose.msra.mxu0 0
    %1024 = vmatpush.bf16.xpose.msra.mxu0 0
    %1025 = vmatpush.bf16.xpose.msra.mxu0 0
    %1026 = vmatpush.bf16.xpose.msra.mxu0 %v1020
    %1027 = vmatpush.bf16.xpose.msra.mxu0 %v1017
    %1028 = vmatpush.bf16.xpose.msra.mxu0 %v1014
    %1029 = vmatpush.bf16.xpose.msra.mxu0 %v1011
    %1030 = vmatmul.bf16.gmra.mxu0 %v1005
    %v1031 = vpop.f32.mrf.mxu0
    %v1032 = vadd.f32 0.0, %v1031
    %v1033 = vpop.f32.mrf.mxu0
    %v1034 = vadd.f32 0.0, %v1033
    %1035 = vmatmul.bf16.gmra.mxu0 %v1008
    %v1036 = vpop.f32.mrf.mxu0
    %v1037 = vadd.f32 0.0, %v1036
    %v1038 = vpop.f32.mrf.mxu0
    %v1039 = vadd.f32 0.0, %v1038
    %1040 = vdwg.mxu0
    %v1041 = vpack.c.bf16 %v816, %v814
    %v1042 = vpack.c.bf16 %v821, %v819
    %vm1043 = vcmask 326656
    %v1045 = vsel %vm1043, %v60, 0
    %1047 = vmatpush.bf16.msra.mxu0 0
    %1048 = vmatpush.bf16.msra.mxu0 0
    %1049 = vmatpush.bf16.msra.mxu0 0
    %1050 = vmatpush.bf16.msra.mxu0 0
    %1051 = vmatpush.bf16.msra.mxu0 0
    %1052 = vmatpush.bf16.msra.mxu0 %v101
    %1053 = vmatpush.bf16.msra.mxu0 %v1042
    %1054 = vmatpush.bf16.msra.mxu0 %v1041
    %1055 = vmatmul.bf16.gmra.mxu0 %v1045
    %v1056 = vpop.f32.mrf.mxu0
    %v1057 = vadd.f32 0.0, %v1056
    %v1058 = vpop.f32.mrf.mxu0
    %1059 = vdwg.mxu0
    %v1060 = vpack.c.bf16 %v1034, %v1032
    %v1061 = vpack.c.bf16 %v1039, %v1037
    %1062 = vmatpush.bf16.msra.mxu0 0
    %1063 = vmatpush.bf16.msra.mxu0 0
    %1064 = vmatpush.bf16.msra.mxu0 0
    %1065 = vmatpush.bf16.msra.mxu0 0
    %1066 = vmatpush.bf16.msra.mxu0 0
    %1067 = vmatpush.bf16.msra.mxu0 %v123
    %1068 = vmatpush.bf16.msra.mxu0 %v1061
    %1069 = vmatpush.bf16.msra.mxu0 %v1060
    %1070 = vmatmul.bf16.gmra.mxu0 %v1045
    %v1071 = vpop.f32.mrf.mxu0
    %v1072 = vadd.f32 0.0, %v1071
    %v1073 = vpop.f32.mrf.mxu0
    %1074 = vdwg.mxu0
    %1076 = vset.pattern.permute.xlu0 0
    %1077 = vperm.xlu0 %1076, %v69
    %v1078 = vpop.permute.xlu0 %1077
    %v1080 = vadd.f32 %v1057, %v1078
    %v1081 = vadd.f32 %v1072, %v1078
    %v1082 = vsel %vm172, %v1080, 0.0
    %v1083 = vsel %vm172, %v1081, 0.0
    %v1084 = vadd.f32 %v1082, %v1083
    %1085 = vadd.xlane.f32.xlu0 %v1084
    %v1086 = vpop.xlane.xlu0 %1085
    %v1087 = vmul.f32 %v1086, %v199
    %v1088 = vsub.f32 %v1080, %v1087
    %v1089 = vsub.f32 %v1081, %v1087
    %v1090 = vmul.f32 %v1088, %v1088
    %v1091 = vmul.f32 %v1089, %v1089
    %v1092 = vsel %vm172, %v1090, 0.0
    %v1093 = vsel %vm172, %v1091, 0.0
    %v1094 = vadd.f32 %v1092, %v1093
    %1095 = vadd.xlane.f32.xlu0 %v1094
    %v1096 = vpop.xlane.xlu0 %1095
    %v1097 = vmul.f32 %v1096, %v199
    %v1098 = vadd.f32 %v1097, 1e-05
    %v1099 = vrsqrt.pop %v1098
    %v1100 = vmul.f32 %v1099, %v1098
    %v1101 = vmul.f32 %v1100, %v1099
    %v1102 = vmul.f32 0.5, %v1101
    %v1103 = vsub.f32 1.5, %v1102
    %v1104 = vmul.f32 %v1099, %v1103
    %vm1105 = vweird.f32 %v1098
    %vm1106 = vweird.f32 %v1099
    %vm1107 = vmor %vm1105, %vm1106
    %v1108 = vsel %vm1107, %v1099, %v1104
    %v1109 = vmul.f32 %v78, %v1108
    %1111 = vset.pattern.permute.xlu0 0
    %1112 = vperm.xlu0 %1111, %v1109
    %v1113 = vpop.permute.xlu0 %1112
    %v1115 = vmul.f32 %v1088, %v1113
    %v1116 = vmul.f32 %v1089, %v1113
    %1118 = vset.pattern.permute.xlu0 0
    %1119 = vperm.xlu0 %1118, %v79
    %v1120 = vpop.permute.xlu0 %1119
    %v1122 = vadd.f32 %v1115, %v1120
    %v1123 = vadd.f32 %v1116, %v1120
    %v1124 = vadd.f32 %v1122, %v46
    %v1125 = vadd.f32 %v1123, %v47
    %v1126 = vpack.c.bf16 %v50, %v50
    %v1127 = vpack.c.bf16 %v51, %v51
    %v1129 = vsel %vm367, %v1126, 0
    %1131 = vmatpush.bf16.msra.mxu0 0
    %1132 = vmatpush.bf16.msra.mxu0 0
    %1133 = vmatpush.bf16.msra.mxu0 0
    %1134 = vmatpush.bf16.msra.mxu0 0
    %1135 = vmatpush.bf16.msra.mxu0 0
    %1136 = vmatpush.bf16.msra.mxu0 0
    %1137 = vmatpush.bf16.msra.mxu0 0
    %1138 = vmatpush.bf16.msra.mxu0 %v1129
    %1139 = vmatmul.bf16.gmra.mxu0 %v362
    %v1140 = vpop.f32.mrf.mxu0
    %v1141 = vadd.f32 0.0, %v1140
    %v1142 = vpop.f32.mrf.mxu0
    %v1143 = vadd.f32 0.0, %v1142
    %1144 = vmatmul.bf16.gmra.mxu0 %v365
    %v1145 = vpop.f32.mrf.mxu0
    %v1146 = vadd.f32 0.0, %v1145
    %v1147 = vpop.f32.mrf.mxu0
    %v1148 = vadd.f32 0.0, %v1147
    %1149 = vdwg.mxu0
    %v1151 = vsel %vm367, %v1127, 0
    %1153 = vmatpush.bf16.msra.mxu0 0
    %1154 = vmatpush.bf16.msra.mxu0 0
    %1155 = vmatpush.bf16.msra.mxu0 0
    %1156 = vmatpush.bf16.msra.mxu0 0
    %1157 = vmatpush.bf16.msra.mxu0 0
    %1158 = vmatpush.bf16.msra.mxu0 0
    %1159 = vmatpush.bf16.msra.mxu0 0
    %1160 = vmatpush.bf16.msra.mxu0 %v1151
    %1161 = vmatmul.bf16.gmra.mxu0 %v362
    %v1162 = vpop.f32.mrf.mxu0
    %v1163 = vadd.f32 0.0, %v1162
    %v1164 = vpop.f32.mrf.mxu0
    %v1165 = vadd.f32 0.0, %v1164
    %1166 = vmatmul.bf16.gmra.mxu0 %v365
    %v1167 = vpop.f32.mrf.mxu0
    %v1168 = vadd.f32 0.0, %v1167
    %v1169 = vpop.f32.mrf.mxu0
    %v1170 = vadd.f32 0.0, %v1169
    %1171 = vdwg.mxu0
    %v1172 = vadd.f32 %v1141, %v415
    %v1173 = vadd.f32 %v1143, %v420
    %v1174 = vadd.f32 %v1146, %v425
    %v1175 = vadd.f32 %v1148, %v430
    %v1176 = vadd.f32 %v1163, %v415
    %v1177 = vadd.f32 %v1165, %v420
    %v1178 = vadd.f32 %v1168, %v425
    %v1179 = vadd.f32 %v1170, %v430
    %v1180 = vsel %vm172, %v1172, 0.0
    %v1181 = vsel %vm172, %v1176, 0.0
    %v1182 = vadd.f32 %v1180, %v1181
    %1183 = vadd.xlane.f32.xlu0 %v1182
    %v1184 = vpop.xlane.xlu0 %1183
    %v1185 = vsel %vm172, %v1173, 0.0
    %v1186 = vsel %vm172, %v1177, 0.0
    %v1187 = vadd.f32 %v1185, %v1186
    %1188 = vadd.xlane.f32.xlu0 %v1187
    %v1189 = vpop.xlane.xlu0 %1188
    %v1190 = vsel %vm172, %v1174, 0.0
    %v1191 = vsel %vm172, %v1178, 0.0
    %v1192 = vadd.f32 %v1190, %v1191
    %1193 = vadd.xlane.f32.xlu0 %v1192
    %v1194 = vpop.xlane.xlu0 %1193
    %v1195 = vsel %vm172, %v1175, 0.0
    %v1196 = vsel %vm172, %v1179, 0.0
    %v1197 = vadd.f32 %v1195, %v1196
    %1198 = vadd.xlane.f32.xlu0 %v1197
    %v1199 = vpop.xlane.xlu0 %1198
    %v1200 = vmul.f32 %v1184, %v199
    %v1201 = vmul.f32 %v1189, %v199
    %v1202 = vmul.f32 %v1194, %v199
    %v1203 = vmul.f32 %v1199, %v199
    %v1204 = vsub.f32 %v1172, %v1200
    %v1205 = vsub.f32 %v1173, %v1201
    %v1206 = vsub.f32 %v1174, %v1202
    %v1207 = vsub.f32 %v1175, %v1203
    %v1208 = vsub.f32 %v1176, %v1200
    %v1209 = vsub.f32 %v1177, %v1201
    %v1210 = vsub.f32 %v1178, %v1202
    %v1211 = vsub.f32 %v1179, %v1203
    %v1212 = vmul.f32 %v1204, %v1204
    %v1213 = vmul.f32 %v1205, %v1205
    %v1214 = vmul.f32 %v1206, %v1206
    %v1215 = vmul.f32 %v1207, %v1207
    %v1216 = vmul.f32 %v1208, %v1208
    %v1217 = vmul.f32 %v1209, %v1209
    %v1218 = vmul.f32 %v1210, %v1210
    %v1219 = vmul.f32 %v1211, %v1211
    %v1220 = vsel %vm172, %v1212, 0.0
    %v1221 = vsel %vm172, %v1216, 0.0
    %v1222 = vadd.f32 %v1220, %v1221
    %1223 = vadd.xlane.f32.xlu0 %v1222
    %v1224 = vpop.xlane.xlu0 %1223
    %v1225 = vsel %vm172, %v1213, 0.0
    %v1226 = vsel %vm172, %v1217, 0.0
    %v1227 = vadd.f32 %v1225, %v1226
    %1228 = vadd.xlane.f32.xlu0 %v1227
    %v1229 = vpop.xlane.xlu0 %1228
    %v1230 = vsel %vm172, %v1214, 0.0
    %v1231 = vsel %vm172, %v1218, 0.0
    %v1232 = vadd.f32 %v1230, %v1231
    %1233 = vadd.xlane.f32.xlu0 %v1232
    %v1234 = vpop.xlane.xlu0 %1233
    %v1235 = vsel %vm172, %v1215, 0.0
    %v1236 = vsel %vm172, %v1219, 0.0
    %v1237 = vadd.f32 %v1235, %v1236
    %1238 = vadd.xlane.f32.xlu0 %v1237
    %v1239 = vpop.xlane.xlu0 %1238
    %v1240 = vmul.f32 %v1224, %v199
    %v1241 = vmul.f32 %v1229, %v199
    %v1242 = vmul.f32 %v1234, %v199
    %v1243 = vmul.f32 %v1239, %v199
    %v1244 = vadd.f32 %v1240, 1e-05
    %v1245 = vadd.f32 %v1241, 1e-05
    %v1246 = vadd.f32 %v1242, 1e-05
    %v1247 = vadd.f32 %v1243, 1e-05
    %v1248 = vrsqrt.pop %v1244
    %v1249 = vmul.f32 %v1248, %v1244
    %v1250 = vmul.f32 %v1249, %v1248
    %v1251 = vmul.f32 0.5, %v1250
    %v1252 = vsub.f32 1.5, %v1251
    %v1253 = vmul.f32 %v1248, %v1252
    %vm1254 = vweird.f32 %v1244
    %vm1255 = vweird.f32 %v1248
    %vm1256 = vmor %vm1254, %vm1255
    %v1257 = vsel %vm1256, %v1248, %v1253
    %v1258 = vrsqrt.pop %v1245
    %v1259 = vmul.f32 %v1258, %v1245
    %v1260 = vmul.f32 %v1259, %v1258
    %v1261 = vmul.f32 0.5, %v1260
    %v1262 = vsub.f32 1.5, %v1261
    %v1263 = vmul.f32 %v1258, %v1262
    %vm1264 = vweird.f32 %v1245
    %vm1265 = vweird.f32 %v1258
    %vm1266 = vmor %vm1264, %vm1265
    %v1267 = vsel %vm1266, %v1258, %v1263
    %v1268 = vrsqrt.pop %v1246
    %v1269 = vmul.f32 %v1268, %v1246
    %v1270 = vmul.f32 %v1269, %v1268
    %v1271 = vmul.f32 0.5, %v1270
    %v1272 = vsub.f32 1.5, %v1271
    %v1273 = vmul.f32 %v1268, %v1272
    %vm1274 = vweird.f32 %v1246
    %vm1275 = vweird.f32 %v1268
    %vm1276 = vmor %vm1274, %vm1275
    %v1277 = vsel %vm1276, %v1268, %v1273
    %v1278 = vrsqrt.pop %v1247
    %v1279 = vmul.f32 %v1278, %v1247
    %v1280 = vmul.f32 %v1279, %v1278
    %v1281 = vmul.f32 0.5, %v1280
    %v1282 = vsub.f32 1.5, %v1281
    %v1283 = vmul.f32 %v1278, %v1282
    %vm1284 = vweird.f32 %v1247
    %vm1285 = vweird.f32 %v1278
    %vm1286 = vmor %vm1284, %vm1285
    %v1287 = vsel %vm1286, %v1278, %v1283
    %v1288 = vmul.f32 %v70, %v1257
    %v1289 = vmul.f32 %v71, %v1267
    %v1290 = vmul.f32 %v72, %v1277
    %v1291 = vmul.f32 %v73, %v1287
    %1293 = vset.pattern.permute.xlu0 0
    %1294 = vperm.xlu0 %1293, %v1288
    %v1295 = vpop.permute.xlu0 %1294
    %1298 = vset.pattern.permute.xlu0 0
    %1299 = vperm.xlu0 %1298, %v1289
    %v1300 = vpop.permute.xlu0 %1299
    %1303 = vset.pattern.permute.xlu0 0
    %1304 = vperm.xlu0 %1303, %v1290
    %v1305 = vpop.permute.xlu0 %1304
    %1308 = vset.pattern.permute.xlu0 0
    %1309 = vperm.xlu0 %1308, %v1291
    %v1310 = vpop.permute.xlu0 %1309
    %v1312 = vmul.f32 %v1204, %v1295
    %v1313 = vmul.f32 %v1205, %v1300
    %v1314 = vmul.f32 %v1206, %v1305
    %v1315 = vmul.f32 %v1207, %v1310
    %v1316 = vmul.f32 %v1208, %v1295
    %v1317 = vmul.f32 %v1209, %v1300
    %v1318 = vmul.f32 %v1210, %v1305
    %v1319 = vmul.f32 %v1211, %v1310
    %v1320 = vadd.f32 %v1312, %v323
    %v1321 = vadd.f32 %v1313, %v328
    %v1322 = vadd.f32 %v1314, %v333
    %v1323 = vadd.f32 %v1315, %v338
    %v1324 = vadd.f32 %v1316, %v323
    %v1325 = vadd.f32 %v1317, %v328
    %v1326 = vadd.f32 %v1318, %v333
    %v1327 = vadd.f32 %v1319, %v338
    %v1328 = vpack.c.bf16 %v1124, %v1124
    %v1329 = vpack.c.bf16 %v1125, %v1125
    %v1331 = vsel %vm99, %v1328, 0
    %1333 = vmatpush.bf16.msra.mxu0 0
    %1334 = vmatpush.bf16.msra.mxu0 0
    %1335 = vmatpush.bf16.msra.mxu0 0
    %1336 = vmatpush.bf16.msra.mxu0 0
    %1337 = vmatpush.bf16.msra.mxu0 0
    %1338 = vmatpush.bf16.msra.mxu0 0
    %1339 = vmatpush.bf16.msra.mxu0 0
    %1340 = vmatpush.bf16.msra.mxu0 %v1331
    %1341 = vmatmul.bf16.gmra.mxu0 %v94
    %v1342 = vpop.f32.mrf.mxu0
    %v1343 = vadd.f32 0.0, %v1342
    %v1344 = vpop.f32.mrf.mxu0
    %v1345 = vadd.f32 0.0, %v1344
    %1346 = vmatmul.bf16.gmra.mxu0 %v97
    %v1347 = vpop.f32.mrf.mxu0
    %v1348 = vadd.f32 0.0, %v1347
    %v1349 = vpop.f32.mrf.mxu0
    %v1350 = vadd.f32 0.0, %v1349
    %1351 = vdwg.mxu0
    %v1353 = vsel %vm99, %v1329, 0
    %1355 = vmatpush.bf16.msra.mxu0 0
    %1356 = vmatpush.bf16.msra.mxu0 0
    %1357 = vmatpush.bf16.msra.mxu0 0
    %1358 = vmatpush.bf16.msra.mxu0 0
    %1359 = vmatpush.bf16.msra.mxu0 0
    %1360 = vmatpush.bf16.msra.mxu0 0
    %1361 = vmatpush.bf16.msra.mxu0 0
    %1362 = vmatpush.bf16.msra.mxu0 %v1353
    %1363 = vmatmul.bf16.gmra.mxu0 %v94
    %v1364 = vpop.f32.mrf.mxu0
    %v1365 = vadd.f32 0.0, %v1364
    %v1366 = vpop.f32.mrf.mxu0
    %v1367 = vadd.f32 0.0, %v1366
    %1368 = vmatmul.bf16.gmra.mxu0 %v97
    %v1369 = vpop.f32.mrf.mxu0
    %v1370 = vadd.f32 0.0, %v1369
    %v1371 = vpop.f32.mrf.mxu0
    %v1372 = vadd.f32 0.0, %v1371
    %1373 = vdwg.mxu0
    %v1374 = vadd.f32 %v1343, %v147
    %v1375 = vadd.f32 %v1345, %v152
    %v1376 = vadd.f32 %v1348, %v157
    %v1377 = vadd.f32 %v1350, %v162
    %v1378 = vadd.f32 %v1365, %v147
    %v1379 = vadd.f32 %v1367, %v152
    %v1380 = vadd.f32 %v1370, %v157
    %v1381 = vadd.f32 %v1372, %v162
    %v1382 = vsel %vm172, %v1374, 0.0
    %v1383 = vsel %vm172, %v1378, 0.0
    %v1384 = vadd.f32 %v1382, %v1383
    %1385 = vadd.xlane.f32.xlu0 %v1384
    %v1386 = vpop.xlane.xlu0 %1385
    %v1387 = vsel %vm172, %v1375, 0.0
    %v1388 = vsel %vm172, %v1379, 0.0
    %v1389 = vadd.f32 %v1387, %v1388
    %1390 = vadd.xlane.f32.xlu0 %v1389
    %v1391 = vpop.xlane.xlu0 %1390
    %v1392 = vsel %vm172, %v1376, 0.0
    %v1393 = vsel %vm172, %v1380, 0.0
    %v1394 = vadd.f32 %v1392, %v1393
    %1395 = vadd.xlane.f32.xlu0 %v1394
    %v1396 = vpop.xlane.xlu0 %1395
    %v1397 = vsel %vm172, %v1377, 0.0
    %v1398 = vsel %vm172, %v1381, 0.0
    %v1399 = vadd.f32 %v1397, %v1398
    %1400 = vadd.xlane.f32.xlu0 %v1399
    %v1401 = vpop.xlane.xlu0 %1400
    %v1402 = vmul.f32 %v1386, %v199
    %v1403 = vmul.f32 %v1391, %v199
    %v1404 = vmul.f32 %v1396, %v199
    %v1405 = vmul.f32 %v1401, %v199
    %v1406 = vsub.f32 %v1374, %v1402
    %v1407 = vsub.f32 %v1375, %v1403
    %v1408 = vsub.f32 %v1376, %v1404
    %v1409 = vsub.f32 %v1377, %v1405
    %v1410 = vsub.f32 %v1378, %v1402
    %v1411 = vsub.f32 %v1379, %v1403
    %v1412 = vsub.f32 %v1380, %v1404
    %v1413 = vsub.f32 %v1381, %v1405
    %v1414 = vmul.f32 %v1406, %v1406
    %v1415 = vmul.f32 %v1407, %v1407
    %v1416 = vmul.f32 %v1408, %v1408
    %v1417 = vmul.f32 %v1409, %v1409
    %v1418 = vmul.f32 %v1410, %v1410
    %v1419 = vmul.f32 %v1411, %v1411
    %v1420 = vmul.f32 %v1412, %v1412
    %v1421 = vmul.f32 %v1413, %v1413
    %v1422 = vsel %vm172, %v1414, 0.0
    %v1423 = vsel %vm172, %v1418, 0.0
    %v1424 = vadd.f32 %v1422, %v1423
    %1425 = vadd.xlane.f32.xlu0 %v1424
    %v1426 = vpop.xlane.xlu0 %1425
    %v1427 = vsel %vm172, %v1415, 0.0
    %v1428 = vsel %vm172, %v1419, 0.0
    %v1429 = vadd.f32 %v1427, %v1428
    %1430 = vadd.xlane.f32.xlu0 %v1429
    %v1431 = vpop.xlane.xlu0 %1430
    %v1432 = vsel %vm172, %v1416, 0.0
    %v1433 = vsel %vm172, %v1420, 0.0
    %v1434 = vadd.f32 %v1432, %v1433
    %1435 = vadd.xlane.f32.xlu0 %v1434
    %v1436 = vpop.xlane.xlu0 %1435
    %v1437 = vsel %vm172, %v1417, 0.0
    %v1438 = vsel %vm172, %v1421, 0.0
    %v1439 = vadd.f32 %v1437, %v1438
    %1440 = vadd.xlane.f32.xlu0 %v1439
    %v1441 = vpop.xlane.xlu0 %1440
    %v1442 = vmul.f32 %v1426, %v199
    %v1443 = vmul.f32 %v1431, %v199
    %v1444 = vmul.f32 %v1436, %v199
    %v1445 = vmul.f32 %v1441, %v199
    %v1446 = vadd.f32 %v1442, 1e-05
    %v1447 = vadd.f32 %v1443, 1e-05
    %v1448 = vadd.f32 %v1444, 1e-05
    %v1449 = vadd.f32 %v1445, 1e-05
    %v1450 = vrsqrt.pop %v1446
    %v1451 = vmul.f32 %v1450, %v1446
    %v1452 = vmul.f32 %v1451, %v1450
    %v1453 = vmul.f32 0.5, %v1452
    %v1454 = vsub.f32 1.5, %v1453
    %v1455 = vmul.f32 %v1450, %v1454
    %vm1456 = vweird.f32 %v1446
    %vm1457 = vweird.f32 %v1450
    %vm1458 = vmor %vm1456, %vm1457
    %v1459 = vsel %vm1458, %v1450, %v1455
    %v1460 = vrsqrt.pop %v1447
    %v1461 = vmul.f32 %v1460, %v1447
    %v1462 = vmul.f32 %v1461, %v1460
    %v1463 = vmul.f32 0.5, %v1462
    %v1464 = vsub.f32 1.5, %v1463
    %v1465 = vmul.f32 %v1460, %v1464
    %vm1466 = vweird.f32 %v1447
    %vm1467 = vweird.f32 %v1460
    %vm1468 = vmor %vm1466, %vm1467
    %v1469 = vsel %vm1468, %v1460, %v1465
    %v1470 = vrsqrt.pop %v1448
    %v1471 = vmul.f32 %v1470, %v1448
    %v1472 = vmul.f32 %v1471, %v1470
    %v1473 = vmul.f32 0.5, %v1472
    %v1474 = vsub.f32 1.5, %v1473
    %v1475 = vmul.f32 %v1470, %v1474
    %vm1476 = vweird.f32 %v1448
    %vm1477 = vweird.f32 %v1470
    %vm1478 = vmor %vm1476, %vm1477
    %v1479 = vsel %vm1478, %v1470, %v1475
    %v1480 = vrsqrt.pop %v1449
    %v1481 = vmul.f32 %v1480, %v1449
    %v1482 = vmul.f32 %v1481, %v1480
    %v1483 = vmul.f32 0.5, %v1482
    %v1484 = vsub.f32 1.5, %v1483
    %v1485 = vmul.f32 %v1480, %v1484
    %vm1486 = vweird.f32 %v1449
    %vm1487 = vweird.f32 %v1480
    %vm1488 = vmor %vm1486, %vm1487
    %v1489 = vsel %vm1488, %v1480, %v1485
    %v1490 = vmul.f32 %v70, %v1459
    %v1491 = vmul.f32 %v71, %v1469
    %v1492 = vmul.f32 %v72, %v1479
    %v1493 = vmul.f32 %v73, %v1489
    %1495 = vset.pattern.permute.xlu0 0
    %1496 = vperm.xlu0 %1495, %v1490
    %v1497 = vpop.permute.xlu0 %1496
    %1500 = vset.pattern.permute.xlu0 0
    %1501 = vperm.xlu0 %1500, %v1491
    %v1502 = vpop.permute.xlu0 %1501
    %1505 = vset.pattern.permute.xlu0 0
    %1506 = vperm.xlu0 %1505, %v1492
    %v1507 = vpop.permute.xlu0 %1506
    %1510 = vset.pattern.permute.xlu0 0
    %1511 = vperm.xlu0 %1510, %v1493
    %v1512 = vpop.permute.xlu0 %1511
    %v1514 = vmul.f32 %v1406, %v1497
    %v1515 = vmul.f32 %v1407, %v1502
    %v1516 = vmul.f32 %v1408, %v1507
    %v1517 = vmul.f32 %v1409, %v1512
    %v1518 = vmul.f32 %v1410, %v1497
    %v1519 = vmul.f32 %v1411, %v1502
    %v1520 = vmul.f32 %v1412, %v1507
    %v1521 = vmul.f32 %v1413, %v1512
    %v1522 = vadd.f32 %v1514, %v323
    %v1523 = vadd.f32 %v1515, %v328
    %v1524 = vadd.f32 %v1516, %v333
    %v1525 = vadd.f32 %v1517, %v338
    %v1526 = vadd.f32 %v1518, %v323
    %v1527 = vadd.f32 %v1519, %v328
    %v1528 = vadd.f32 %v1520, %v333
    %v1529 = vadd.f32 %v1521, %v338
    %v1530 = vpack.c.bf16 %v1522, %v1522
    %v1531 = vpack.c.bf16 %v1523, %v1523
    %v1532 = vpack.c.bf16 %v1524, %v1524
    %v1533 = vpack.c.bf16 %v1525, %v1525
    %v1534 = vpack.c.bf16 %v1526, %v1526
    %v1535 = vpack.c.bf16 %v1527, %v1527
    %v1536 = vpack.c.bf16 %v1528, %v1528
    %v1537 = vpack.c.bf16 %v1529, %v1529
    %v1538 = vpack.c.bf16 %v1320, %v1320
    %v1539 = vpack.c.bf16 %v1321, %v1321
    %v1540 = vpack.c.bf16 %v1322, %v1322
    %v1541 = vpack.c.bf16 %v1323, %v1323
    %v1542 = vpack.c.bf16 %v1324, %v1324
    %v1543 = vpack.c.bf16 %v1325, %v1325
    %v1544 = vpack.c.bf16 %v1326, %v1326
    %v1545 = vpack.c.bf16 %v1327, %v1327
    %v1550 = vunpack.c.l.b16 %v1530
    %v1551 = vunpack.c.l.b16 %v1531
    %v1552 = vunpack.c.l.b16 %v1532
    %v1553 = vunpack.c.l.b16 %v1533
    %v1554 = vpack.c.b16 %v1551, %v1550
    %v1555 = vpack.c.b16 %v1553, %v1552
    %1558 = vxpose.xlu0.c.b16.start [1/8] %v1554, 128
    %1559 = vxpose.xlu0.c.b16.cont [2/8] %v1555, 128
    %1560 = vxpose.xlu0.c.b16.cont [3/8] 0, 128
    %1561 = vxpose.xlu0.c.b16.cont [4/8] 0, 128
    %1562 = vxpose.xlu0.c.b16.cont [5/8] 0, 128
    %1563 = vxpose.xlu0.c.b16.cont [6/8] 0, 128
    %1564 = vxpose.xlu0.c.b16.cont [7/8] 0, 128
    %1565 = vxpose.xlu0.c.b16.end [8/8] 0, 128
    %v1566 = vpop.trf.xlu0
    %v1567 = vpop.trf.xlu0
    %v1568 = vpop.trf.xlu0
    %v1569 = vpop.trf.xlu0
    %v1570 = vpop.trf.xlu0
    %v1571 = vpop.trf.xlu0
    %v1572 = vpop.trf.xlu0
    %v1573 = vpop.trf.xlu0
    %v1578 = vunpack.c.l.b16 %v1538
    %v1579 = vunpack.c.l.b16 %v1539
    %v1580 = vunpack.c.l.b16 %v1540
    %v1581 = vunpack.c.l.b16 %v1541
    %v1582 = vpack.c.b16 %v1579, %v1578
    %v1583 = vpack.c.b16 %v1581, %v1580
    %v1587 = vsel %vm644, %v1566, 0
    %v1590 = vsel %vm644, %v1567, 0
    %v1593 = vsel %vm644, %v1568, 0
    %v1596 = vsel %vm644, %v1569, 0
    %1598 = vmatpush.bf16.msra.mxu0 0
    %1599 = vmatpush.bf16.msra.mxu0 0
    %1600 = vmatpush.bf16.msra.mxu0 0
    %1601 = vmatpush.bf16.msra.mxu0 0
    %1602 = vmatpush.bf16.msra.mxu0 0
    %1603 = vmatpush.bf16.msra.mxu0 0
    %1604 = vmatpush.bf16.msra.mxu0 %v1583
    %1605 = vmatpush.bf16.msra.mxu0 %v1582
    %1606 = vmatmul.bf16.gmra.mxu0 %v1587
    %v1607 = vpop.f32.mrf.mxu0
    %v1608 = vadd.f32 0.0, %v1607
    %v1609 = vpop.f32.mrf.mxu0
    %v1610 = vadd.f32 0.0, %v1609
    %1611 = vmatmul.bf16.gmra.mxu0 %v1590
    %v1612 = vpop.f32.mrf.mxu0
    %v1613 = vadd.f32 0.0, %v1612
    %v1614 = vpop.f32.mrf.mxu0
    %v1615 = vadd.f32 0.0, %v1614
    %1616 = vmatmul.bf16.gmra.mxu0 %v1593
    %v1617 = vpop.f32.mrf.mxu0
    %v1618 = vadd.f32 0.0, %v1617
    %v1619 = vpop.f32.mrf.mxu0
    %v1620 = vadd.f32 0.0, %v1619
    %1621 = vmatmul.bf16.gmra.mxu0 %v1596
    %v1622 = vpop.f32.mrf.mxu0
    %v1623 = vadd.f32 0.0, %v1622
    %v1624 = vpop.f32.mrf.mxu0
    %v1625 = vadd.f32 0.0, %v1624
    %1626 = vdwg.mxu0
    %v1627 = vmul.f32 %v1608, 0.17677669
    %v1628 = vmul.f32 %v1610, 0.17677669
    %v1629 = vmul.f32 %v1613, 0.17677669
    %v1630 = vmul.f32 %v1615, 0.17677669
    %v1631 = vmul.f32 %v1618, 0.17677669
    %v1632 = vmul.f32 %v1620, 0.17677669
    %v1633 = vmul.f32 %v1623, 0.17677669
    %v1634 = vmul.f32 %v1625, 0.17677669
    %v1635 = vsel %vm172, %v1627, -inf
    %1636 = vmax.xlane.f32.xlu0 %v1635
    %v1637 = vpop.xlane.xlu0 %1636
    %v1638 = vsel %vm172, %v1628, -inf
    %1639 = vmax.xlane.f32.xlu0 %v1638
    %v1640 = vpop.xlane.xlu0 %1639
    %v1641 = vsel %vm172, %v1629, -inf
    %1642 = vmax.xlane.f32.xlu0 %v1641
    %v1643 = vpop.xlane.xlu0 %1642
    %v1644 = vsel %vm172, %v1630, -inf
    %1645 = vmax.xlane.f32.xlu0 %v1644
    %v1646 = vpop.xlane.xlu0 %1645
    %v1647 = vsel %vm172, %v1631, -inf
    %1648 = vmax.xlane.f32.xlu0 %v1647
    %v1649 = vpop.xlane.xlu0 %1648
    %v1650 = vsel %vm172, %v1632, -inf
    %1651 = vmax.xlane.f32.xlu0 %v1650
    %v1652 = vpop.xlane.xlu0 %1651
    %v1653 = vsel %vm172, %v1633, -inf
    %1654 = vmax.xlane.f32.xlu0 %v1653
    %v1655 = vpop.xlane.xlu0 %1654
    %v1656 = vsel %vm172, %v1634, -inf
    %1657 = vmax.xlane.f32.xlu0 %v1656
    %v1658 = vpop.xlane.xlu0 %1657
    %v1659 = vsub.f32 %v1627, %v1637
    %v1660 = vsub.f32 %v1628, %v1640
    %v1661 = vsub.f32 %v1629, %v1643
    %v1662 = vsub.f32 %v1630, %v1646
    %v1663 = vsub.f32 %v1631, %v1649
    %v1664 = vsub.f32 %v1632, %v1652
    %v1665 = vsub.f32 %v1633, %v1655
    %v1666 = vsub.f32 %v1634, %v1658
    %v1667 = vmul.f32 %v1659, 1.442695
    %v1668 = vpow.pop %v1667
    %v1669 = vmul.f32 %v1660, 1.442695
    %v1670 = vpow.pop %v1669
    %v1671 = vmul.f32 %v1661, 1.442695
    %v1672 = vpow.pop %v1671
    %v1673 = vmul.f32 %v1662, 1.442695
    %v1674 = vpow.pop %v1673
    %v1675 = vmul.f32 %v1663, 1.442695
    %v1676 = vpow.pop %v1675
    %v1677 = vmul.f32 %v1664, 1.442695
    %v1678 = vpow.pop %v1677
    %v1679 = vmul.f32 %v1665, 1.442695
    %v1680 = vpow.pop %v1679
    %v1681 = vmul.f32 %v1666, 1.442695
    %v1682 = vpow.pop %v1681
    %v1683 = vsel %vm172, %v1668, 0.0
    %1684 = vadd.xlane.f32.xlu0 %v1683
    %v1685 = vpop.xlane.xlu0 %1684
    %v1686 = vsel %vm172, %v1670, 0.0
    %1687 = vadd.xlane.f32.xlu0 %v1686
    %v1688 = vpop.xlane.xlu0 %1687
    %v1689 = vsel %vm172, %v1672, 0.0
    %1690 = vadd.xlane.f32.xlu0 %v1689
    %v1691 = vpop.xlane.xlu0 %1690
    %v1692 = vsel %vm172, %v1674, 0.0
    %1693 = vadd.xlane.f32.xlu0 %v1692
    %v1694 = vpop.xlane.xlu0 %1693
    %v1695 = vsel %vm172, %v1676, 0.0
    %1696 = vadd.xlane.f32.xlu0 %v1695
    %v1697 = vpop.xlane.xlu0 %1696
    %v1698 = vsel %vm172, %v1678, 0.0
    %1699 = vadd.xlane.f32.xlu0 %v1698
    %v1700 = vpop.xlane.xlu0 %1699
    %v1701 = vsel %vm172, %v1680, 0.0
    %1702 = vadd.xlane.f32.xlu0 %v1701
    %v1703 = vpop.xlane.xlu0 %1702
    %v1704 = vsel %vm172, %v1682, 0.0
    %1705 = vadd.xlane.f32.xlu0 %v1704
    %v1706 = vpop.xlane.xlu0 %1705
    %v1707 = vrcp.pop %v1685
    %v1708 = vrcp.pop %v1688
    %v1709 = vrcp.pop %v1691
    %v1710 = vrcp.pop %v1694
    %v1711 = vrcp.pop %v1697
    %v1712 = vrcp.pop %v1700
    %v1713 = vrcp.pop %v1703
    %v1714 = vrcp.pop %v1706
    %v1715 = vmul.f32 %v1668, %v1707
    %v1716 = vmul.f32 %v1670, %v1708
    %v1717 = vmul.f32 %v1672, %v1709
    %v1718 = vmul.f32 %v1674, %v1710
    %v1719 = vmul.f32 %v1676, %v1711
    %v1720 = vmul.f32 %v1678, %v1712
    %v1721 = vmul.f32 %v1680, %v1713
    %v1722 = vmul.f32 %v1682, %v1714
    %v1723 = vpack.c.bf16 %v1716, %v1715
    %v1724 = vpack.c.bf16 %v1718, %v1717
    %v1725 = vpack.c.bf16 %v1720, %v1719
    %v1726 = vpack.c.bf16 %v1722, %v1721
    %v1728 = vsel %vm172, %v1582, 0
    %v1731 = vsel %vm172, %v1583, 0
    %v1734 = vsel %vm172, %v1723, 0
    %v1737 = vsel %vm172, %v1724, 0
    %v1740 = vsel %vm172, %v1725, 0
    %v1743 = vsel %vm172, %v1726, 0
    %1745 = vmatpush.bf16.xpose.msra.mxu0 0
    %1746 = vmatpush.bf16.xpose.msra.mxu0 0
    %1747 = vmatpush.bf16.xpose.msra.mxu0 0
    %1748 = vmatpush.bf16.xpose.msra.mxu0 0
    %1749 = vmatpush.bf16.xpose.msra.mxu0 %v1743
    %1750 = vmatpush.bf16.xpose.msra.mxu0 %v1740
    %1751 = vmatpush.bf16.xpose.msra.mxu0 %v1737
    %1752 = vmatpush.bf16.xpose.msra.mxu0 %v1734
    %1753 = vmatmul.bf16.gmra.mxu0 %v1728
    %v1754 = vpop.f32.mrf.mxu0
    %v1755 = vadd.f32 0.0, %v1754
    %v1756 = vpop.f32.mrf.mxu0
    %v1757 = vadd.f32 0.0, %v1756
    %1758 = vmatmul.bf16.gmra.mxu0 %v1731
    %v1759 = vpop.f32.mrf.mxu0
    %v1760 = vadd.f32 0.0, %v1759
    %v1761 = vpop.f32.mrf.mxu0
    %v1762 = vadd.f32 0.0, %v1761
    %1763 = vdwg.mxu0
    %v1768 = vunpack.c.l.b16 %v1534
    %v1769 = vunpack.c.l.b16 %v1535
    %v1770 = vunpack.c.l.b16 %v1536
    %v1771 = vunpack.c.l.b16 %v1537
    %v1772 = vpack.c.b16 %v1769, %v1768
    %v1773 = vpack.c.b16 %v1771, %v1770
    %1776 = vxpose.xlu0.c.b16.start [1/8] %v1772, 128
    %1777 = vxpose.xlu0.c.b16.cont [2/8] %v1773, 128
    %1778 = vxpose.xlu0.c.b16.cont [3/8] 0, 128
    %1779 = vxpose.xlu0.c.b16.cont [4/8] 0, 128
    %1780 = vxpose.xlu0.c.b16.cont [5/8] 0, 128
    %1781 = vxpose.xlu0.c.b16.cont [6/8] 0, 128
    %1782 = vxpose.xlu0.c.b16.cont [7/8] 0, 128
    %1783 = vxpose.xlu0.c.b16.end [8/8] 0, 128
    %v1784 = vpop.trf.xlu0
    %v1785 = vpop.trf.xlu0
    %v1786 = vpop.trf.xlu0
    %v1787 = vpop.trf.xlu0
    %v1788 = vpop.trf.xlu0
    %v1789 = vpop.trf.xlu0
    %v1790 = vpop.trf.xlu0
    %v1791 = vpop.trf.xlu0
    %v1796 = vunpack.c.l.b16 %v1542
    %v1797 = vunpack.c.l.b16 %v1543
    %v1798 = vunpack.c.l.b16 %v1544
    %v1799 = vunpack.c.l.b16 %v1545
    %v1800 = vpack.c.b16 %v1797, %v1796
    %v1801 = vpack.c.b16 %v1799, %v1798
    %v1805 = vsel %vm644, %v1784, 0
    %v1808 = vsel %vm644, %v1785, 0
    %v1811 = vsel %vm644, %v1786, 0
    %v1814 = vsel %vm644, %v1787, 0
    %1816 = vmatpush.bf16.msra.mxu0 0
    %1817 = vmatpush.bf16.msra.mxu0 0
    %1818 = vmatpush.bf16.msra.mxu0 0
    %1819 = vmatpush.bf16.msra.mxu0 0
    %1820 = vmatpush.bf16.msra.mxu0 0
    %1821 = vmatpush.bf16.msra.mxu0 0
    %1822 = vmatpush.bf16.msra.mxu0 %v1801
    %1823 = vmatpush.bf16.msra.mxu0 %v1800
    %1824 = vmatmul.bf16.gmra.mxu0 %v1805
    %v1825 = vpop.f32.mrf.mxu0
    %v1826 = vadd.f32 0.0, %v1825
    %v1827 = vpop.f32.mrf.mxu0
    %v1828 = vadd.f32 0.0, %v1827
    %1829 = vmatmul.bf16.gmra.mxu0 %v1808
    %v1830 = vpop.f32.mrf.mxu0
    %v1831 = vadd.f32 0.0, %v1830
    %v1832 = vpop.f32.mrf.mxu0
    %v1833 = vadd.f32 0.0, %v1832
    %1834 = vmatmul.bf16.gmra.mxu0 %v1811
    %v1835 = vpop.f32.mrf.mxu0
    %v1836 = vadd.f32 0.0, %v1835
    %v1837 = vpop.f32.mrf.mxu0
    %v1838 = vadd.f32 0.0, %v1837
    %1839 = vmatmul.bf16.gmra.mxu0 %v1814
    %v1840 = vpop.f32.mrf.mxu0
    %v1841 = vadd.f32 0.0, %v1840
    %v1842 = vpop.f32.mrf.mxu0
    %v1843 = vadd.f32 0.0, %v1842
    %1844 = vdwg.mxu0
    %v1845 = vmul.f32 %v1826, 0.17677669
    %v1846 = vmul.f32 %v1828, 0.17677669
    %v1847 = vmul.f32 %v1831, 0.17677669
    %v1848 = vmul.f32 %v1833, 0.17677669
    %v1849 = vmul.f32 %v1836, 0.17677669
    %v1850 = vmul.f32 %v1838, 0.17677669
    %v1851 = vmul.f32 %v1841, 0.17677669
    %v1852 = vmul.f32 %v1843, 0.17677669
    %v1853 = vsel %vm172, %v1845, -inf
    %1854 = vmax.xlane.f32.xlu0 %v1853
    %v1855 = vpop.xlane.xlu0 %1854
    %v1856 = vsel %vm172, %v1846, -inf
    %1857 = vmax.xlane.f32.xlu0 %v1856
    %v1858 = vpop.xlane.xlu0 %1857
    %v1859 = vsel %vm172, %v1847, -inf
    %1860 = vmax.xlane.f32.xlu0 %v1859
    %v1861 = vpop.xlane.xlu0 %1860
    %v1862 = vsel %vm172, %v1848, -inf
    %1863 = vmax.xlane.f32.xlu0 %v1862
    %v1864 = vpop.xlane.xlu0 %1863
    %v1865 = vsel %vm172, %v1849, -inf
    %1866 = vmax.xlane.f32.xlu0 %v1865
    %v1867 = vpop.xlane.xlu0 %1866
    %v1868 = vsel %vm172, %v1850, -inf
    %1869 = vmax.xlane.f32.xlu0 %v1868
    %v1870 = vpop.xlane.xlu0 %1869
    %v1871 = vsel %vm172, %v1851, -inf
    %1872 = vmax.xlane.f32.xlu0 %v1871
    %v1873 = vpop.xlane.xlu0 %1872
    %v1874 = vsel %vm172, %v1852, -inf
    %1875 = vmax.xlane.f32.xlu0 %v1874
    %v1876 = vpop.xlane.xlu0 %1875
    %v1877 = vsub.f32 %v1845, %v1855
    %v1878 = vsub.f32 %v1846, %v1858
    %v1879 = vsub.f32 %v1847, %v1861
    %v1880 = vsub.f32 %v1848, %v1864
    %v1881 = vsub.f32 %v1849, %v1867
    %v1882 = vsub.f32 %v1850, %v1870
    %v1883 = vsub.f32 %v1851, %v1873
    %v1884 = vsub.f32 %v1852, %v1876
    %v1885 = vmul.f32 %v1877, 1.442695
    %v1886 = vpow.pop %v1885
    %v1887 = vmul.f32 %v1878, 1.442695
    %v1888 = vpow.pop %v1887
    %v1889 = vmul.f32 %v1879, 1.442695
    %v1890 = vpow.pop %v1889
    %v1891 = vmul.f32 %v1880, 1.442695
    %v1892 = vpow.pop %v1891
    %v1893 = vmul.f32 %v1881, 1.442695
    %v1894 = vpow.pop %v1893
    %v1895 = vmul.f32 %v1882, 1.442695
    %v1896 = vpow.pop %v1895
    %v1897 = vmul.f32 %v1883, 1.442695
    %v1898 = vpow.pop %v1897
    %v1899 = vmul.f32 %v1884, 1.442695
    %v1900 = vpow.pop %v1899
    %v1901 = vsel %vm172, %v1886, 0.0
    %1902 = vadd.xlane.f32.xlu0 %v1901
    %v1903 = vpop.xlane.xlu0 %1902
    %v1904 = vsel %vm172, %v1888, 0.0
    %1905 = vadd.xlane.f32.xlu0 %v1904
    %v1906 = vpop.xlane.xlu0 %1905
    %v1907 = vsel %vm172, %v1890, 0.0
    %1908 = vadd.xlane.f32.xlu0 %v1907
    %v1909 = vpop.xlane.xlu0 %1908
    %v1910 = vsel %vm172, %v1892, 0.0
    %1911 = vadd.xlane.f32.xlu0 %v1910
    %v1912 = vpop.xlane.xlu0 %1911
    %v1913 = vsel %vm172, %v1894, 0.0
    %1914 = vadd.xlane.f32.xlu0 %v1913
    %v1915 = vpop.xlane.xlu0 %1914
    %v1916 = vsel %vm172, %v1896, 0.0
    %1917 = vadd.xlane.f32.xlu0 %v1916
    %v1918 = vpop.xlane.xlu0 %1917
    %v1919 = vsel %vm172, %v1898, 0.0
    %1920 = vadd.xlane.f32.xlu0 %v1919
    %v1921 = vpop.xlane.xlu0 %1920
    %v1922 = vsel %vm172, %v1900, 0.0
    %1923 = vadd.xlane.f32.xlu0 %v1922
    %v1924 = vpop.xlane.xlu0 %1923
    %v1925 = vrcp.pop %v1903
    %v1926 = vrcp.pop %v1906
    %v1927 = vrcp.pop %v1909
    %v1928 = vrcp.pop %v1912
    %v1929 = vrcp.pop %v1915
    %v1930 = vrcp.pop %v1918
    %v1931 = vrcp.pop %v1921
    %v1932 = vrcp.pop %v1924
    %v1933 = vmul.f32 %v1886, %v1925
    %v1934 = vmul.f32 %v1888, %v1926
    %v1935 = vmul.f32 %v1890, %v1927
    %v1936 = vmul.f32 %v1892, %v1928
    %v1937 = vmul.f32 %v1894, %v1929
    %v1938 = vmul.f32 %v1896, %v1930
    %v1939 = vmul.f32 %v1898, %v1931
    %v1940 = vmul.f32 %v1900, %v1932
    %v1941 = vpack.c.bf16 %v1934, %v1933
    %v1942 = vpack.c.bf16 %v1936, %v1935
    %v1943 = vpack.c.bf16 %v1938, %v1937
    %v1944 = vpack.c.bf16 %v1940, %v1939
    %v1946 = vsel %vm172, %v1800, 0
    %v1949 = vsel %vm172, %v1801, 0
    %v1952 = vsel %vm172, %v1941, 0
    %v1955 = vsel %vm172, %v1942, 0
    %v1958 = vsel %vm172, %v1943, 0
    %v1961 = vsel %vm172, %v1944, 0
    %1963 = vmatpush.bf16.xpose.msra.mxu0 0
    %1964 = vmatpush.bf16.xpose.msra.mxu0 0
    %1965 = vmatpush.bf16.xpose.msra.mxu0 0
    %1966 = vmatpush.bf16.xpose.msra.mxu0 0
    %1967 = vmatpush.bf16.xpose.msra.mxu0 %v1961
    %1968 = vmatpush.bf16.xpose.msra.mxu0 %v1958
    %1969 = vmatpush.bf16.xpose.msra.mxu0 %v1955
    %1970 = vmatpush.bf16.xpose.msra.mxu0 %v1952
    %1971 = vmatmul.bf16.gmra.mxu0 %v1946
    %v1972 = vpop.f32.mrf.mxu0
    %v1973 = vadd.f32 0.0, %v1972
    %v1974 = vpop.f32.mrf.mxu0
    %v1975 = vadd.f32 0.0, %v1974
    %1976 = vmatmul.bf16.gmra.mxu0 %v1949
    %v1977 = vpop.f32.mrf.mxu0
    %v1978 = vadd.f32 0.0, %v1977
    %v1979 = vpop.f32.mrf.mxu0
    %v1980 = vadd.f32 0.0, %v1979
    %1981 = vdwg.mxu0
    %v1982 = vpack.c.bf16 %v1757, %v1755
    %v1983 = vpack.c.bf16 %v1762, %v1760
    %1984 = vmatpush.bf16.msra.mxu0 0
    %1985 = vmatpush.bf16.msra.mxu0 0
    %1986 = vmatpush.bf16.msra.mxu0 0
    %1987 = vmatpush.bf16.msra.mxu0 0
    %1988 = vmatpush.bf16.msra.mxu0 0
    %1989 = vmatpush.bf16.msra.mxu0 %v1331
    %1990 = vmatpush.bf16.msra.mxu0 %v1983
    %1991 = vmatpush.bf16.msra.mxu0 %v1982
    %1992 = vmatmul.bf16.gmra.mxu0 %v1045
    %v1993 = vpop.f32.mrf.mxu0
    %v1994 = vadd.f32 0.0, %v1993
    %v1995 = vpop.f32.mrf.mxu0
    %1996 = vdwg.mxu0
    %v1997 = vpack.c.bf16 %v1975, %v1973
    %v1998 = vpack.c.bf16 %v1980, %v1978
    %1999 = vmatpush.bf16.msra.mxu0 0
    %2000 = vmatpush.bf16.msra.mxu0 0
    %2001 = vmatpush.bf16.msra.mxu0 0
    %2002 = vmatpush.bf16.msra.mxu0 0
    %2003 = vmatpush.bf16.msra.mxu0 0
    %2004 = vmatpush.bf16.msra.mxu0 %v1353
    %2005 = vmatpush.bf16.msra.mxu0 %v1998
    %2006 = vmatpush.bf16.msra.mxu0 %v1997
    %2007 = vmatmul.bf16.gmra.mxu0 %v1045
    %v2008 = vpop.f32.mrf.mxu0
    %v2009 = vadd.f32 0.0, %v2008
    %v2010 = vpop.f32.mrf.mxu0
    %2011 = vdwg.mxu0
    %v2012 = vadd.f32 %v1994, %v1078
    %v2013 = vadd.f32 %v2009, %v1078
    %v2014 = vsel %vm172, %v2012, 0.0
    %v2015 = vsel %vm172, %v2013, 0.0
    %v2016 = vadd.f32 %v2014, %v2015
    %2017 = vadd.xlane.f32.xlu0 %v2016
    %v2018 = vpop.xlane.xlu0 %2017
    %v2019 = vmul.f32 %v2018, %v199
    %v2020 = vsub.f32 %v2012, %v2019
    %v2021 = vsub.f32 %v2013, %v2019
    %v2022 = vmul.f32 %v2020, %v2020
    %v2023 = vmul.f32 %v2021, %v2021
    %v2024 = vsel %vm172, %v2022, 0.0
    %v2025 = vsel %vm172, %v2023, 0.0
    %v2026 = vadd.f32 %v2024, %v2025
    %2027 = vadd.xlane.f32.xlu0 %v2026
    %v2028 = vpop.xlane.xlu0 %2027
    %v2029 = vmul.f32 %v2028, %v199
    %v2030 = vadd.f32 %v2029, 1e-05
    %v2031 = vrsqrt.pop %v2030
    %v2032 = vmul.f32 %v2031, %v2030
    %v2033 = vmul.f32 %v2032, %v2031
    %v2034 = vmul.f32 0.5, %v2033
    %v2035 = vsub.f32 1.5, %v2034
    %v2036 = vmul.f32 %v2031, %v2035
    %vm2037 = vweird.f32 %v2030
    %vm2038 = vweird.f32 %v2031
    %vm2039 = vmor %vm2037, %vm2038
    %v2040 = vsel %vm2039, %v2031, %v2036
    %v2041 = vmul.f32 %v78, %v2040
    %2043 = vset.pattern.permute.xlu0 0
    %2044 = vperm.xlu0 %2043, %v2041
    %v2045 = vpop.permute.xlu0 %2044
    %v2047 = vmul.f32 %v2020, %v2045
    %v2048 = vmul.f32 %v2021, %v2045
    %v2049 = vadd.f32 %v2047, %v1120
    %v2050 = vadd.f32 %v2048, %v1120
    %v2051 = vadd.f32 %v2049, %v1124
    %v2052 = vadd.f32 %v2050, %v1125
    %vm2053 = vcmp.ge.f32.partialorder %v2051, 0.0
    %vm2054 = vcmp.ge.f32.partialorder %v2052, 0.0
    %v2055 = vmul.f32 %v2051, 0.01
    %v2056 = vmul.f32 %v2052, 0.01
    %v2057 = vsel %vm2053, %v2051, %v2055
    %v2058 = vsel %vm2054, %v2052, %v2056
    %2059 = vst.msk [vmem:[#allocation2] sm:$0xff] %vm172, %v2057
    %2060 = vst.msk [vmem:[#allocation2 + $0x8] sm:$0xff] %vm172, %v2058
    // Predicated region
    $region54: #{tpu_custom_call.1} parent=1 // pred_check
      _
    $region55: #{tpu_custom_call.1} parent=1 // pred_check_branch
      %2062 = sbr.rel (0) target = $region57
    $region56: #{tpu_custom_call.1} parent=1 // pred_region
      %2064 = vsyncadd [#allocation3], 0
      %s2065 = sshll.u32 [#allocation2], 4
      %s2066 = int_to_ptr.vmem [resolvable:$true] %s2065
      %s2067 = sshll.u32 %s13, 4
      %s2068 = int_to_ptr.hbm [resolvable:$true] %s2067
      %2073 = dma.vmem_to_hbm [thread:$0]  %s2066, 256, %s2068, [#allocation3], 128, 128, 8
    $region57: #{tpu_custom_call.1} parent=1 // pred_fallthru
      _
    // Predicated region
    $region58: #{tpu_custom_call.1} parent=1 // pred_check
      _
    $region59: #{tpu_custom_call.1} parent=1 // pred_check_branch
      %2075 = sbr.rel (0) target = $region61
    $region60: #{tpu_custom_call.1} parent=1 // pred_region
      %2077 = dma.done [#allocation3], 256
    $region61: #{tpu_custom_call.1} parent=1 // pred_fallthru
      _
    %2078 = vsyncpa [#allocation3], 1

</llo_original>
